<compile_context>
chip_gen: v5e
topology: v5e:2x2
jax: 0.10.0
libtpu: 0.0.40
codegen_flags: <defaults>
</compile_context>

<pallas_src>
import math
import functools

import jax
import jax.numpy as jnp
from jax.experimental import pallas as pl
from jax.experimental.pallas import tpu as pltpu


# ----------------------------------------------------------------------------
# Fused MHA kernel: one grid step == one batch element.
#   q/k/v refs : (1, S, D)  activations
#   wq/wk/wv   : (H, D, dk) head-major projection weights
#   bq/bk/bv   : (H, dk)    head-major projection biases
#   wo         : (H, dk, D) head-major output-projection weight
#   bo         : (1, D)     output-projection bias
#   outputs    : (1, S, D) context, (1, H, S, S) attention weights
# ----------------------------------------------------------------------------
def _mha_fused_kernel(q_ref, k_ref, v_ref,
                      wq_ref, wk_ref, wv_ref,
                      bq_ref, bk_ref, bv_ref,
                      wo_ref, bo_ref,
                      o_ref, w_ref, *, scale):
    H, _, _ = wq_ref.shape
    _, S, D = q_ref.shape

    q = q_ref[0].astype(jnp.float32)            # (S, D)
    k = k_ref[0].astype(jnp.float32)            # (S, D)
    v = v_ref[0].astype(jnp.float32)            # (S, D)

    # Broadcast the activation slab across heads once; all per-head work below
    # is a batched dot_general with the head as the leading batch dimension.
    qb = jnp.broadcast_to(q, (H, S, D))
    kb = jnp.broadcast_to(k, (H, S, D))
    vb = jnp.broadcast_to(v, (H, S, D))

    wq = wq_ref[...].astype(jnp.float32)        # (H, D, dk)
    wk = wk_ref[...].astype(jnp.float32)
    wv = wv_ref[...].astype(jnp.float32)

    # Per-head Q/K/V projections (+bias): (H, S, dk), no transposes emitted.
    Qh = jnp.einsum("hsd,hde->hse", qb, wq,
                    preferred_element_type=jnp.float32) + bq_ref[...][:, None, :]
    Kh = jnp.einsum("hsd,hde->hse", kb, wk,
                    preferred_element_type=jnp.float32) + bk_ref[...][:, None, :]
    Vh = jnp.einsum("hsd,hde->hse", vb, wv,
                    preferred_element_type=jnp.float32) + bv_ref[...][:, None, :]

    # Scores: contract dk directly (no k.T / XLU transpose).  (H, S, S)
    scores = jnp.einsum("hqe,hke->hqk", Qh, Kh,
                        preferred_element_type=jnp.float32) * scale

    # Numerically-stable softmax in f32 (exact division: returned weights must
    # match the reference).
    m = jnp.max(scores, axis=-1, keepdims=True)
    p = jnp.exp(scores - m)
    denom = jnp.sum(p, axis=-1, keepdims=True)
    attn = p / denom                            # (H, S, S)

    # Context per head: (H, S, dk)
    ctx = jnp.einsum("hqk,hke->hqe", attn, Vh,
                     preferred_element_type=jnp.float32)

    # Output projection: sum over heads of (S, dk) @ (dk, D), then bias.
    per_head_out = jnp.einsum("hse,hed->hsd", ctx, wo_ref[...].astype(jnp.float32),
                              preferred_element_type=jnp.float32)   # (H, S, D)
    out = jnp.sum(per_head_out, axis=0) + bo_ref[...]                # (S, D)

    o_ref[0] = out.astype(o_ref.dtype)
    w_ref[0] = attn.astype(w_ref.dtype)


# ----------------------------------------------------------------------------
# Wrapper reproducing RelativePositionAttention.forward (== MHA forward,
# eval mode, mask=None, return_attention=True).
# Weights are stored transposed vs torch.nn.Linear: w* has shape [d_in, d_out].
# ----------------------------------------------------------------------------
def relative_position_attention_forward(query, key, value,
                                        wq, bq, wk, bk, wv, bv, wo, bo,
                                        *, num_heads):
    B, S, D = query.shape
    H = num_heads
    dk = D // H
    scale = 1.0 / math.sqrt(dk)

    # One-time head-major weight views (weights only; activations are never
    # transposed in HBM).
    wq_h = wq.reshape(D, H, dk).transpose(1, 0, 2)   # (H, D, dk)
    wk_h = wk.reshape(D, H, dk).transpose(1, 0, 2)
    wv_h = wv.reshape(D, H, dk).transpose(1, 0, 2)
    wo_h = wo.reshape(H, dk, D)                      # free reshape
    bq_h = bq.reshape(H, dk)
    bk_h = bk.reshape(H, dk)
    bv_h = bv.reshape(H, dk)
    bo_2d = bo.reshape(1, D)

    kernel = functools.partial(_mha_fused_kernel, scale=scale)

    act_spec = pl.BlockSpec((1, S, D), lambda b: (b, 0, 0))

    def full_spec(shape):
        return pl.BlockSpec(shape, lambda b, _s=shape: (0,) * len(_s))

    # Advisory cost estimate so XLA schedules around the fused call sensibly.
    flops = int(2 * B * S * D * D * 4 + 2 * B * H * S * S * dk * 2)
    transcendentals = int(B * H * S * S)
    bytes_accessed = int(4 * (3 * B * S * D + 4 * D * D + 4 * D
                              + B * S * D + B * H * S * S))
    cost = pl.CostEstimate(flops=flops, transcendentals=transcendentals,
                           bytes_accessed=bytes_accessed)

    out, attn_w = pl.pallas_call(
        kernel,
        grid=(B,),
        in_specs=[
            act_spec, act_spec, act_spec,
            full_spec((H, D, dk)), full_spec((H, D, dk)), full_spec((H, D, dk)),
            full_spec((H, dk)), full_spec((H, dk)), full_spec((H, dk)),
            full_spec((H, dk, D)), full_spec((1, D)),
        ],
        out_specs=(
            pl.BlockSpec((1, S, D), lambda b: (b, 0, 0)),
            pl.BlockSpec((1, H, S, S), lambda b: (b, 0, 0, 0)),
        ),
        out_shape=(
            jax.ShapeDtypeStruct((B, S, D), query.dtype),
            jax.ShapeDtypeStruct((B, H, S, S), jnp.float32),
        ),
        compiler_params=pltpu.CompilerParams(
            dimension_semantics=("parallel",),
        ),
        cost_estimate=cost,
    )(query, key, value, wq_h, wk_h, wv_h, bq_h, bk_h, bv_h, wo_h, bo_2d)
    return out, attn_w


# ----------------------------------------------------------------------------
# Pure-JAX reference (mirrors the PyTorch forward) for a sanity check
# ----------------------------------------------------------------------------
def mha_reference(query, key, value, wq, bq, wk, bk, wv, bv, wo, bo, *, num_heads):
    B, S, D = query.shape
    dk = D // num_heads
    hp = jax.lax.Precision.HIGHEST
    Q = (jnp.matmul(query, wq, precision=hp) + bq).reshape(B, S, num_heads, dk).transpose(0, 2, 1, 3)
    K = (jnp.matmul(key, wk, precision=hp) + bk).reshape(B, S, num_heads, dk).transpose(0, 2, 1, 3)
    V = (jnp.matmul(value, wv, precision=hp) + bv).reshape(B, S, num_heads, dk).transpose(0, 2, 1, 3)
    scores = jnp.einsum("bhqd,bhkd->bhqk", Q, K, precision=hp) / math.sqrt(dk)
    attn = jax.nn.softmax(scores, axis=-1)
    ctx = jnp.einsum("bhqk,bhkd->bhqd", attn, V, precision=hp)
    ctx = ctx.transpose(0, 2, 1, 3).reshape(B, S, D)
    return jnp.matmul(ctx, wo, precision=hp) + bo, attn


if __name__ == "__main__":
    # Small config consistent with the module: d_model=32, num_heads=8 -> d_k=4
    B, S, D = 2, 8, 32
    num_heads = 8

    key0 = jax.random.PRNGKey(0)
    kx, kq, kk, kv, ko, kbq, kbk, kbv, kbo = jax.random.split(key0, 9)
    init_std = 0.02  # matches init_weights(module, init_std=0.02)

    x = jax.random.normal(kx, (B, S, D), dtype=jnp.float32)
    wq = init_std * jax.random.normal(kq, (D, D), dtype=jnp.float32)
    wk = init_std * jax.random.normal(kk, (D, D), dtype=jnp.float32)
    wv = init_std * jax.random.normal(kv, (D, D), dtype=jnp.float32)
    wo = init_std * jax.random.normal(ko, (D, D), dtype=jnp.float32)
    bq = init_std * jax.random.normal(kbq, (D,), dtype=jnp.float32)
    bk = init_std * jax.random.normal(kbk, (D,), dtype=jnp.float32)
    bv = init_std * jax.random.normal(kbv, (D,), dtype=jnp.float32)
    bo = init_std * jax.random.normal(kbo, (D,), dtype=jnp.float32)

    out, attn_w = relative_position_attention_forward(
        x, x, x, wq, bq, wk, bk, wv, bv, wo, bo, num_heads=num_heads
    )
    out = jax.block_until_ready(out)
    attn_w = jax.block_until_ready(attn_w)

    ref_out, ref_w = mha_reference(
        x, x, x, wq, bq, wk, bk, wv, bv, wo, bo, num_heads=num_heads
    )

    assert out.shape == (B, S, D)
    assert attn_w.shape == (B, num_heads, S, S)
    assert jnp.allclose(out, ref_out, atol=1e-5, rtol=1e-5), float(
        jnp.max(jnp.abs(out - ref_out))
    )
    assert jnp.allclose(attn_w, ref_w, atol=1e-5, rtol=1e-5), float(
        jnp.max(jnp.abs(attn_w - ref_w))
    )

    print("KERNEL_OK")
</pallas_src>

<mosaic_0001>
module attributes {stable_mosaic.version = 11 : i64} {
  func.func @_mha_fused_kernel(%arg0: i32, %arg1: memref<1x8x32xf32, #tpu.memory_space<vmem>>, %arg2: memref<1x8x32xf32, #tpu.memory_space<vmem>>, %arg3: memref<1x8x32xf32, #tpu.memory_space<vmem>>, %arg4: memref<8x32x4xf32, #tpu.memory_space<vmem>>, %arg5: memref<8x32x4xf32, #tpu.memory_space<vmem>>, %arg6: memref<8x32x4xf32, #tpu.memory_space<vmem>>, %arg7: memref<8x4xf32, #tpu.memory_space<vmem>>, %arg8: memref<8x4xf32, #tpu.memory_space<vmem>>, %arg9: memref<8x4xf32, #tpu.memory_space<vmem>>, %arg10: memref<8x4x32xf32, #tpu.memory_space<vmem>>, %arg11: memref<1x32xf32, #tpu.memory_space<vmem>>, %arg12: memref<1x8x32xf32, #tpu.memory_space<vmem>>, %arg13: memref<1x8x8x8xf32, #tpu.memory_space<vmem>>) attributes {dimension_semantics = [#tpu.dimension_semantics<parallel>], iteration_bounds = array<i64: 2>, scalar_prefetch = 0 : i64, scratch_operands = 0 : i64, tpu.core_type = #tpu.core_type<tc>, window_params = [{transform_indices = @transform_0, window_bounds = array<i64: 1, 8, 32>}, {transform_indices = @transform_1, window_bounds = array<i64: 1, 8, 32>}, {transform_indices = @transform_2, window_bounds = array<i64: 1, 8, 32>}, {pipeline_mode = #tpu.pipeline_mode<synchronous>, transform_indices = @transform_3, window_bounds = array<i64: 8, 32, 4>}, {pipeline_mode = #tpu.pipeline_mode<synchronous>, transform_indices = @transform_4, window_bounds = array<i64: 8, 32, 4>}, {pipeline_mode = #tpu.pipeline_mode<synchronous>, transform_indices = @transform_5, window_bounds = array<i64: 8, 32, 4>}, {pipeline_mode = #tpu.pipeline_mode<synchronous>, transform_indices = @transform_6, window_bounds = array<i64: 8, 4>}, {pipeline_mode = #tpu.pipeline_mode<synchronous>, transform_indices = @transform_7, window_bounds = array<i64: 8, 4>}, {pipeline_mode = #tpu.pipeline_mode<synchronous>, transform_indices = @transform_8, window_bounds = array<i64: 8, 4>}, {pipeline_mode = #tpu.pipeline_mode<synchronous>, transform_indices = @transform_9, window_bounds = array<i64: 8, 4, 32>}, {pipeline_mode = #tpu.pipeline_mode<synchronous>, transform_indices = @transform_10, window_bounds = array<i64: 1, 32>}, {transform_indices = @transform_11, window_bounds = array<i64: 1, 8, 32>}, {transform_indices = @transform_12, window_bounds = array<i64: 1, 8, 8, 8>}]} {
    %c0 = arith.constant 0 : index
    %c0_0 = arith.constant 0 : index
    %c0_1 = arith.constant 0 : index
    %0 = vector.load %arg1[%c0, %c0_0, %c0_1] : memref<1x8x32xf32, #tpu.memory_space<vmem>>, vector<1x8x32xf32>
    %1 = vector.shape_cast %0 : vector<1x8x32xf32> to vector<8x32xf32>
    %c0_2 = arith.constant 0 : index
    %c0_3 = arith.constant 0 : index
    %c0_4 = arith.constant 0 : index
    %2 = vector.load %arg2[%c0_2, %c0_3, %c0_4] : memref<1x8x32xf32, #tpu.memory_space<vmem>>, vector<1x8x32xf32>
    %3 = vector.shape_cast %2 : vector<1x8x32xf32> to vector<8x32xf32>
    %c0_5 = arith.constant 0 : index
    %c0_6 = arith.constant 0 : index
    %c0_7 = arith.constant 0 : index
    %4 = vector.load %arg3[%c0_5, %c0_6, %c0_7] : memref<1x8x32xf32, #tpu.memory_space<vmem>>, vector<1x8x32xf32>
    %5 = vector.shape_cast %4 : vector<1x8x32xf32> to vector<8x32xf32>
    %6 = vector.shape_cast %1 : vector<8x32xf32> to vector<1x8x32xf32>
    %7 = vector.broadcast %6 : vector<1x8x32xf32> to vector<8x8x32xf32>
    %8 = vector.shape_cast %3 : vector<8x32xf32> to vector<1x8x32xf32>
    %9 = vector.broadcast %8 : vector<1x8x32xf32> to vector<8x8x32xf32>
    %10 = vector.shape_cast %5 : vector<8x32xf32> to vector<1x8x32xf32>
    %11 = vector.broadcast %10 : vector<1x8x32xf32> to vector<8x8x32xf32>
    %c0_8 = arith.constant 0 : index
    %c0_9 = arith.constant 0 : index
    %c0_10 = arith.constant 0 : index
    %12 = vector.load %arg4[%c0_8, %c0_9, %c0_10] : memref<8x32x4xf32, #tpu.memory_space<vmem>>, vector<8x32x4xf32>
    %c0_11 = arith.constant 0 : index
    %c0_12 = arith.constant 0 : index
    %c0_13 = arith.constant 0 : index
    %13 = vector.load %arg5[%c0_11, %c0_12, %c0_13] : memref<8x32x4xf32, #tpu.memory_space<vmem>>, vector<8x32x4xf32>
    %c0_14 = arith.constant 0 : index
    %c0_15 = arith.constant 0 : index
    %c0_16 = arith.constant 0 : index
    %14 = vector.load %arg6[%c0_14, %c0_15, %c0_16] : memref<8x32x4xf32, #tpu.memory_space<vmem>>, vector<8x32x4xf32>
    "tpu.trace_start"() <{level = 10 : i32, message = "hsd,hde->hse"}> : () -> ()
    %cst = arith.constant dense<0.000000e+00> : vector<8x8x4xf32>
    %15 = tpu.matmul %7, %12, %cst {dimension_numbers = #tpu.dot_dimension_numbers<[2], [1], [1], [2], [0, 0, 0, 1, 1, 2], [0], [0]>} : vector<8x8x32xf32>, vector<8x32x4xf32>, vector<8x8x4xf32> -> vector<8x8x4xf32>
    "tpu.trace_stop"() : () -> ()
    %c0_17 = arith.constant 0 : index
    %c0_18 = arith.constant 0 : index
    %16 = vector.load %arg7[%c0_17, %c0_18] : memref<8x4xf32, #tpu.memory_space<vmem>>, vector<8x4xf32>
    %17 = vector.shape_cast %16 : vector<8x4xf32> to vector<8x1x4xf32>
    %18 = vector.broadcast %17 : vector<8x1x4xf32> to vector<8x8x4xf32>
    %19 = arith.addf %15, %18 : vector<8x8x4xf32>
    "tpu.trace_start"() <{level = 10 : i32, message = "hsd,hde->hse"}> : () -> ()
    %cst_19 = arith.constant dense<0.000000e+00> : vector<8x8x4xf32>
    %20 = tpu.matmul %9, %13, %cst_19 {dimension_numbers = #tpu.dot_dimension_numbers<[2], [1], [1], [2], [0, 0, 0, 1, 1, 2], [0], [0]>} : vector<8x8x32xf32>, vector<8x32x4xf32>, vector<8x8x4xf32> -> vector<8x8x4xf32>
    "tpu.trace_stop"() : () -> ()
    %c0_20 = arith.constant 0 : index
    %c0_21 = arith.constant 0 : index
    %21 = vector.load %arg8[%c0_20, %c0_21] : memref<8x4xf32, #tpu.memory_space<vmem>>, vector<8x4xf32>
    %22 = vector.shape_cast %21 : vector<8x4xf32> to vector<8x1x4xf32>
    %23 = vector.broadcast %22 : vector<8x1x4xf32> to vector<8x8x4xf32>
    %24 = arith.addf %20, %23 : vector<8x8x4xf32>
    "tpu.trace_start"() <{level = 10 : i32, message = "hsd,hde->hse"}> : () -> ()
    %cst_22 = arith.constant dense<0.000000e+00> : vector<8x8x4xf32>
    %25 = tpu.matmul %11, %14, %cst_22 {dimension_numbers = #tpu.dot_dimension_numbers<[2], [1], [1], [2], [0, 0, 0, 1, 1, 2], [0], [0]>} : vector<8x8x32xf32>, vector<8x32x4xf32>, vector<8x8x4xf32> -> vector<8x8x4xf32>
    "tpu.trace_stop"() : () -> ()
    %c0_23 = arith.constant 0 : index
    %c0_24 = arith.constant 0 : index
    %26 = vector.load %arg9[%c0_23, %c0_24] : memref<8x4xf32, #tpu.memory_space<vmem>>, vector<8x4xf32>
    %27 = vector.shape_cast %26 : vector<8x4xf32> to vector<8x1x4xf32>
    %28 = vector.broadcast %27 : vector<8x1x4xf32> to vector<8x8x4xf32>
    %29 = arith.addf %25, %28 : vector<8x8x4xf32>
    "tpu.trace_start"() <{level = 10 : i32, message = "hqe,hke->hqk"}> : () -> ()
    %cst_25 = arith.constant dense<0.000000e+00> : vector<8x8x8xf32>
    %30 = tpu.matmul %19, %24, %cst_25 {dimension_numbers = #tpu.dot_dimension_numbers<[2], [2], [1], [1], [0, 0, 0, 1, 1, 1], [0], [0]>} : vector<8x8x4xf32>, vector<8x8x4xf32>, vector<8x8x8xf32> -> vector<8x8x8xf32>
    "tpu.trace_stop"() : () -> ()
    %cst_26 = arith.constant 5.000000e-01 : f32
    %31 = vector.broadcast %cst_26 : f32 to vector<8x8x8xf32>
    %32 = arith.mulf %30, %31 : vector<8x8x8xf32>
    %cst_27 = arith.constant dense<0xFF800000> : vector<8x8xf32>
    %33 = vector.multi_reduction <maximumf>, %32, %cst_27 [2] : vector<8x8x8xf32> to vector<8x8xf32>
    %34 = vector.shape_cast %33 : vector<8x8xf32> to vector<8x8x1xf32>
    %35 = vector.broadcast %34 : vector<8x8x1xf32> to vector<8x8x8xf32>
    %36 = arith.subf %32, %35 : vector<8x8x8xf32>
    %37 = math.exp %36 : vector<8x8x8xf32>
    %cst_28 = arith.constant dense<0.000000e+00> : vector<8x8xf32>
    %38 = vector.multi_reduction <add>, %37, %cst_28 [2] : vector<8x8x8xf32> to vector<8x8xf32>
    %39 = vector.shape_cast %38 : vector<8x8xf32> to vector<8x8x1xf32>
    %40 = vector.broadcast %39 : vector<8x8x1xf32> to vector<8x8x8xf32>
    %41 = arith.divf %37, %40 : vector<8x8x8xf32>
    "tpu.trace_start"() <{level = 10 : i32, message = "hqk,hke->hqe"}> : () -> ()
    %cst_29 = arith.constant dense<0.000000e+00> : vector<8x8x4xf32>
    %42 = tpu.matmul %41, %29, %cst_29 {dimension_numbers = #tpu.dot_dimension_numbers<[2], [1], [1], [2], [0, 0, 0, 1, 1, 2], [0], [0]>} : vector<8x8x8xf32>, vector<8x8x4xf32>, vector<8x8x4xf32> -> vector<8x8x4xf32>
    "tpu.trace_stop"() : () -> ()
    %c0_30 = arith.constant 0 : index
    %c0_31 = arith.constant 0 : index
    %c0_32 = arith.constant 0 : index
    %43 = vector.load %arg10[%c0_30, %c0_31, %c0_32] : memref<8x4x32xf32, #tpu.memory_space<vmem>>, vector<8x4x32xf32>
    "tpu.trace_start"() <{level = 10 : i32, message = "hse,hed->hsd"}> : () -> ()
    %cst_33 = arith.constant dense<0.000000e+00> : vector<8x8x32xf32>
    %44 = tpu.matmul %42, %43, %cst_33 {dimension_numbers = #tpu.dot_dimension_numbers<[2], [1], [1], [2], [0, 0, 0, 1, 1, 2], [0], [0]>} : vector<8x8x4xf32>, vector<8x4x32xf32>, vector<8x8x32xf32> -> vector<8x8x32xf32>
    "tpu.trace_stop"() : () -> ()
    %cst_34 = arith.constant dense<0.000000e+00> : vector<8x32xf32>
    %45 = vector.multi_reduction <add>, %44, %cst_34 [0] : vector<8x8x32xf32> to vector<8x32xf32>
    %c0_35 = arith.constant 0 : index
    %c0_36 = arith.constant 0 : index
    %46 = vector.load %arg11[%c0_35, %c0_36] : memref<1x32xf32, #tpu.memory_space<vmem>>, vector<1x32xf32>
    %47 = vector.broadcast %46 : vector<1x32xf32> to vector<8x32xf32>
    %48 = arith.addf %45, %47 : vector<8x32xf32>
    %c0_37 = arith.constant 0 : index
    %c0_38 = arith.constant 0 : index
    %c0_39 = arith.constant 0 : index
    %49 = vector.load %arg12[%c0_37, %c0_38, %c0_39] : memref<1x8x32xf32, #tpu.memory_space<vmem>>, vector<1x8x32xf32>
    %50 = vector.shape_cast %49 : vector<1x8x32xf32> to vector<8x32xf32>
    %51 = vector.shape_cast %48 : vector<8x32xf32> to vector<1x8x32xf32>
    tpu.vector_store %arg12[%c0_37, %c0_38, %c0_39], %51 {strides = array<i32>} : memref<1x8x32xf32, #tpu.memory_space<vmem>>, vector<1x8x32xf32>,
    %c0_40 = arith.constant 0 : index
    %c0_41 = arith.constant 0 : index
    %c0_42 = arith.constant 0 : index
    %c0_43 = arith.constant 0 : index
    %52 = vector.load %arg13[%c0_40, %c0_41, %c0_42, %c0_43] : memref<1x8x8x8xf32, #tpu.memory_space<vmem>>, vector<1x8x8x8xf32>
    %53 = vector.shape_cast %52 : vector<1x8x8x8xf32> to vector<8x8x8xf32>
    %54 = vector.shape_cast %41 : vector<8x8x8xf32> to vector<1x8x8x8xf32>
    tpu.vector_store %arg13[%c0_40, %c0_41, %c0_42, %c0_43], %54 {strides = array<i32>} : memref<1x8x8x8xf32, #tpu.memory_space<vmem>>, vector<1x8x8x8xf32>,
    return
  }
  func.func @transform_0(%arg0: i32) -> (i32, i32, i32) {
    %c0_i32 = arith.constant 0 : i32
    %c0_i32_0 = arith.constant 0 : i32
    %c0_i32_1 = arith.constant 0 : i32
    return %arg0, %c0_i32, %c0_i32_0 : i32, i32, i32
  }
  func.func @transform_1(%arg0: i32) -> (i32, i32, i32) {
    %c0_i32 = arith.constant 0 : i32
    %c0_i32_0 = arith.constant 0 : i32
    %c0_i32_1 = arith.constant 0 : i32
    return %arg0, %c0_i32, %c0_i32_0 : i32, i32, i32
  }
  func.func @transform_2(%arg0: i32) -> (i32, i32, i32) {
    %c0_i32 = arith.constant 0 : i32
    %c0_i32_0 = arith.constant 0 : i32
    %c0_i32_1 = arith.constant 0 : i32
    return %arg0, %c0_i32, %c0_i32_0 : i32, i32, i32
  }
  func.func @transform_3(%arg0: i32) -> (i32, i32, i32) {
    %c0_i32 = arith.constant 0 : i32
    %c0_i32_0 = arith.constant 0 : i32
    %c0_i32_1 = arith.constant 0 : i32
    %c0_i32_2 = arith.constant 0 : i32
    return %c0_i32, %c0_i32_0, %c0_i32_1 : i32, i32, i32
  }
  func.func @transform_4(%arg0: i32) -> (i32, i32, i32) {
    %c0_i32 = arith.constant 0 : i32
    %c0_i32_0 = arith.constant 0 : i32
    %c0_i32_1 = arith.constant 0 : i32
    %c0_i32_2 = arith.constant 0 : i32
    return %c0_i32, %c0_i32_0, %c0_i32_1 : i32, i32, i32
  }
  func.func @transform_5(%arg0: i32) -> (i32, i32, i32) {
    %c0_i32 = arith.constant 0 : i32
    %c0_i32_0 = arith.constant 0 : i32
    %c0_i32_1 = arith.constant 0 : i32
    %c0_i32_2 = arith.constant 0 : i32
    return %c0_i32, %c0_i32_0, %c0_i32_1 : i32, i32, i32
  }
  func.func @transform_6(%arg0: i32) -> (i32, i32) {
    %c0_i32 = arith.constant 0 : i32
    %c0_i32_0 = arith.constant 0 : i32
    %c0_i32_1 = arith.constant 0 : i32
    return %c0_i32, %c0_i32_0 : i32, i32
  }
  func.func @transform_7(%arg0: i32) -> (i32, i32) {
    %c0_i32 = arith.constant 0 : i32
    %c0_i32_0 = arith.constant 0 : i32
    %c0_i32_1 = arith.constant 0 : i32
    return %c0_i32, %c0_i32_0 : i32, i32
  }
  func.func @transform_8(%arg0: i32) -> (i32, i32) {
    %c0_i32 = arith.constant 0 : i32
    %c0_i32_0 = arith.constant 0 : i32
    %c0_i32_1 = arith.constant 0 : i32
    return %c0_i32, %c0_i32_0 : i32, i32
  }
  func.func @transform_9(%arg0: i32) -> (i32, i32, i32) {
    %c0_i32 = arith.constant 0 : i32
    %c0_i32_0 = arith.constant 0 : i32
    %c0_i32_1 = arith.constant 0 : i32
    %c0_i32_2 = arith.constant 0 : i32
    return %c0_i32, %c0_i32_0, %c0_i32_1 : i32, i32, i32
  }
  func.func @transform_10(%arg0: i32) -> (i32, i32) {
    %c0_i32 = arith.constant 0 : i32
    %c0_i32_0 = arith.constant 0 : i32
    %c0_i32_1 = arith.constant 0 : i32
    return %c0_i32, %c0_i32_0 : i32, i32
  }
  func.func @transform_11(%arg0: i32) -> (i32, i32, i32) {
    %c0_i32 = arith.constant 0 : i32
    %c0_i32_0 = arith.constant 0 : i32
    %c0_i32_1 = arith.constant 0 : i32
    return %arg0, %c0_i32, %c0_i32_0 : i32, i32, i32
  }
  func.func @transform_12(%arg0: i32) -> (i32, i32, i32, i32) {
    %c0_i32 = arith.constant 0 : i32
    %c0_i32_0 = arith.constant 0 : i32
    %c0_i32_1 = arith.constant 0 : i32
    %c0_i32_2 = arith.constant 0 : i32
    return %arg0, %c0_i32, %c0_i32_0, %c0_i32_1 : i32, i32, i32, i32
  }
}

</mosaic_0001>

<llo_original>
// kernel: tpu_custom_call.1
$region0: #{tpu_custom_call.1}
  #allocation0 [shape = 'u32[]', space=smem, size = 0x4, offset = 0x4, fixed_abs, tag = 'smem constant byte address 0x4 - core index']
  #allocation1 [shape = 'u32[72,128]{1,0:T(1,128)}', space=vmem, size = 0x9000, scoped, tag = 'internal scratch']
  %s0 = inlined_call_operand.vmem [shape: f32[2,8,32], index: 0, kind: input, shape index: {}]
  %s1 = inlined_call_operand.vmem [shape: f32[2,8,32], index: 1, kind: input, shape index: {}]
  %s2 = inlined_call_operand.vmem [shape: f32[2,8,32], index: 2, kind: input, shape index: {}]
  %s3 = inlined_call_operand.vmem [shape: f32[8,32,4], index: 3, kind: input, shape index: {}]
  %s4 = inlined_call_operand.vmem [shape: f32[8,32,4], index: 4, kind: input, shape index: {}]
  %s5 = inlined_call_operand.vmem [shape: f32[8,32,4], index: 5, kind: input, shape index: {}]
  %s6 = inlined_call_operand.vmem [shape: f32[8,4], index: 6, kind: input, shape index: {}]
  %s7 = inlined_call_operand.vmem [shape: f32[8,4], index: 7, kind: input, shape index: {}]
  %s8 = inlined_call_operand.vmem [shape: f32[8,4], index: 8, kind: input, shape index: {}]
  %s9 = inlined_call_operand.vmem [shape: f32[8,4,32], index: 9, kind: input, shape index: {}]
  %s10 = inlined_call_operand.vmem [shape: f32[1,32], index: 10, kind: input, shape index: {}]
  %s11 = inlined_call_operand.hbm [shape: f32[2,8,32], index: 11, kind: output, shape index: {0}]
  %s12 = inlined_call_operand.hbm [shape: f32[2,8,8,8], index: 12, kind: output, shape index: {1}]
  %13 = xla_tuple %s11, %s12
  %s14 = sld [smem:[#allocation0]]
  $region85: #{tpu_custom_call.1} parent=0
    _
  %s16 = ssub.s32 1, %s14
  %s17 = scalar_select 0, %s16, %s14
  $region1: #{tpu_custom_call.1} parent=0
    #allocation2 [shape = 'u8[8192]{0}', space=vmem, size = 0x2000, scoped, tag = 'output window, operand 0']
    #allocation3 [shape = 's32[2]{0}', space=sflag, size = 0x8, scoped, tag = 'scoped memory for tpu_custom_call.1']
    #allocation4 [shape = 'u8[65536]{0}', space=vmem, size = 0x10000, scoped, tag = 'output window, operand 1']
    #allocation5 [shape = 's32[2]{0}', space=sflag, size = 0x8, scoped, tag = 'scoped memory for tpu_custom_call.1']
    %18 = vsyncpa [#allocation3], 0
    %s19 = scalar_lea.sflag [#allocation3], 1
    %20 = vsyncpa %s19, 0
    %21 = vsyncpa [#allocation5], 0
    %s22 = scalar_lea.sflag [#allocation5], 1
    %23 = vsyncpa %s22, 0
    loop: start=0, step=1, limit=4
    $region2: #{tpu_custom_call.1} parent=1 // loop_pre_header
      _
    $region3: #{tpu_custom_call.1} parent=1 // loop_header
      %s25 = sphi 0, %s29
      %p26 = scmp.ge.s32.totalorder %s25, 4
      %s35 = sphi 0, %s37
      %s38 = sphi 0, %s35
      %s39 = sphi 0, %s38
      %s55 = sphi 0, %s39
      %s61 = sphi 0, %s63
      %s64 = sphi 0, %s61
      %s65 = sphi 0, %s64
      %s81 = sphi 0, %s65
      %s87 = sphi 0, %s89
      %s90 = sphi 0, %s87
      %s91 = sphi 0, %s90
      %s107 = sphi 0, %s91
      %s111 = sphi 0, %s111
      %s113 = sphi 0, %s111
      %s114 = sphi 0, %s113
      %s128 = sphi 0, %s114
      %s132 = sphi 0, %s132
      %s134 = sphi 0, %s132
      %s135 = sphi 0, %s134
      %s149 = sphi 0, %s135
      %s153 = sphi 0, %s153
      %s155 = sphi 0, %s153
      %s156 = sphi 0, %s155
      %s170 = sphi 0, %s156
      %s174 = sphi 0, %s174
      %s176 = sphi 0, %s174
      %s177 = sphi 0, %s176
      %s191 = sphi 0, %s177
      %s195 = sphi 0, %s195
      %s197 = sphi 0, %s195
      %s198 = sphi 0, %s197
      %s212 = sphi 0, %s198
      %s216 = sphi 0, %s216
      %s218 = sphi 0, %s216
      %s219 = sphi 0, %s218
      %s233 = sphi 0, %s219
      %s237 = sphi 0, %s237
      %s239 = sphi 0, %s237
      %s240 = sphi 0, %s239
      %s254 = sphi 0, %s240
      %s258 = sphi 0, %s258
      %s260 = sphi 0, %s258
      %s261 = sphi 0, %s260
      %s275 = sphi 0, %s261
      %s281 = sphi 0, %s283
      %s284 = sphi 0, %s281
      %s285 = sphi 0, %s284
      %s301 = sphi 0, %s285
      %s307 = sphi 0, %s309
      %s310 = sphi 0, %s307
      %s311 = sphi 0, %s310
      %s327 = sphi 0, %s311
    $region4: #{tpu_custom_call.1} parent=1 // loop_header_branch
      %28 = sbr.rel (%p26) target = $region8
    $region5: #{tpu_custom_call.1} parent=1 // loop_body
      %s30 = ssub.s32 %s25, 1
      %s31 = ssub.s32 %s25, 2
      %s32 = sadd.s32 %s25, 1
      %s33 = ssub.s32 %s25, %s32
      %p34 = scmp.eq.s32.totalorder %s33, 0
      %s36 = sadd.s32 %s35, 1
      %s37 = scalar_select %p34, %s35, %s36
      %p40 = pneg %p34
      %p41 = scmp.eq.s32.totalorder %s25, 1
      %p42 = por %p40, %p41
      %p43 = scmp.ne.s32.totalorder %s35, %s38
      %p44 = scmp.eq.s32.totalorder %s25, 0
      %p45 = por %p43, %p44
      %p46 = scmp.ne.s32.totalorder %s35, %s38
      %p47 = scmp.eq.s32.totalorder %s30, 1
      %p48 = por %p46, %p47
      %p49 = scmp.ne.s32.totalorder %s38, %s39
      %p50 = scmp.eq.s32.totalorder %s30, 0
      %p51 = por %p49, %p50
      %p52 = scmp.ne.s32.totalorder %s38, %s39
      %p53 = scmp.eq.s32.totalorder %s31, 1
      %p54 = por %p52, %p53
      %p56 = scmp.ne.s32.totalorder %s39, %s55
      %p57 = scmp.eq.s32.totalorder %s31, 0
      %p58 = por %p56, %p57
      %s59 = ssub.s32 %s25, %s32
      %p60 = scmp.eq.s32.totalorder %s59, 0
      %s62 = sadd.s32 %s61, 1
      %s63 = scalar_select %p60, %s61, %s62
      %p66 = pneg %p60
      %p67 = scmp.eq.s32.totalorder %s25, 1
      %p68 = por %p66, %p67
      %p69 = scmp.ne.s32.totalorder %s61, %s64
      %p70 = scmp.eq.s32.totalorder %s25, 0
      %p71 = por %p69, %p70
      %p72 = scmp.ne.s32.totalorder %s61, %s64
      %p73 = scmp.eq.s32.totalorder %s30, 1
      %p74 = por %p72, %p73
      %p75 = scmp.ne.s32.totalorder %s64, %s65
      %p76 = scmp.eq.s32.totalorder %s30, 0
      %p77 = por %p75, %p76
      %p78 = scmp.ne.s32.totalorder %s64, %s65
      %p79 = scmp.eq.s32.totalorder %s31, 1
      %p80 = por %p78, %p79
      %p82 = scmp.ne.s32.totalorder %s65, %s81
      %p83 = scmp.eq.s32.totalorder %s31, 0
      %p84 = por %p82, %p83
      %s85 = ssub.s32 %s25, %s32
      %p86 = scmp.eq.s32.totalorder %s85, 0
      %s88 = sadd.s32 %s87, 1
      %s89 = scalar_select %p86, %s87, %s88
      %p92 = pneg %p86
      %p93 = scmp.eq.s32.totalorder %s25, 1
      %p94 = por %p92, %p93
      %p95 = scmp.ne.s32.totalorder %s87, %s90
      %p96 = scmp.eq.s32.totalorder %s25, 0
      %p97 = por %p95, %p96
      %p98 = scmp.ne.s32.totalorder %s87, %s90
      %p99 = scmp.eq.s32.totalorder %s30, 1
      %p100 = por %p98, %p99
      %p101 = scmp.ne.s32.totalorder %s90, %s91
      %p102 = scmp.eq.s32.totalorder %s30, 0
      %p103 = por %p101, %p102
      %p104 = scmp.ne.s32.totalorder %s90, %s91
      %p105 = scmp.eq.s32.totalorder %s31, 1
      %p106 = por %p104, %p105
      %p108 = scmp.ne.s32.totalorder %s91, %s107
      %p109 = scmp.eq.s32.totalorder %s31, 0
      %p110 = por %p108, %p109
      %s112 = sadd.s32 %s111, 1
      %p115 = scmp.eq.s32.totalorder %s25, 1
      %p116 = scmp.ne.s32.totalorder %s111, %s113
      %p117 = scmp.eq.s32.totalorder %s25, 0
      %p118 = por %p116, %p117
      %p119 = scmp.ne.s32.totalorder %s111, %s113
      %p120 = scmp.eq.s32.totalorder %s30, 1
      %p121 = por %p119, %p120
      %p122 = scmp.ne.s32.totalorder %s113, %s114
      %p123 = scmp.eq.s32.totalorder %s30, 0
      %p124 = por %p122, %p123
      %p125 = scmp.ne.s32.totalorder %s113, %s114
      %p126 = scmp.eq.s32.totalorder %s31, 1
      %p127 = por %p125, %p126
      %p129 = scmp.ne.s32.totalorder %s114, %s128
      %p130 = scmp.eq.s32.totalorder %s31, 0
      %p131 = por %p129, %p130
      %s133 = sadd.s32 %s132, 1
      %p136 = scmp.eq.s32.totalorder %s25, 1
      %p137 = scmp.ne.s32.totalorder %s132, %s134
      %p138 = scmp.eq.s32.totalorder %s25, 0
      %p139 = por %p137, %p138
      %p140 = scmp.ne.s32.totalorder %s132, %s134
      %p141 = scmp.eq.s32.totalorder %s30, 1
      %p142 = por %p140, %p141
      %p143 = scmp.ne.s32.totalorder %s134, %s135
      %p144 = scmp.eq.s32.totalorder %s30, 0
      %p145 = por %p143, %p144
      %p146 = scmp.ne.s32.totalorder %s134, %s135
      %p147 = scmp.eq.s32.totalorder %s31, 1
      %p148 = por %p146, %p147
      %p150 = scmp.ne.s32.totalorder %s135, %s149
      %p151 = scmp.eq.s32.totalorder %s31, 0
      %p152 = por %p150, %p151
      %s154 = sadd.s32 %s153, 1
      %p157 = scmp.eq.s32.totalorder %s25, 1
      %p158 = scmp.ne.s32.totalorder %s153, %s155
      %p159 = scmp.eq.s32.totalorder %s25, 0
      %p160 = por %p158, %p159
      %p161 = scmp.ne.s32.totalorder %s153, %s155
      %p162 = scmp.eq.s32.totalorder %s30, 1
      %p163 = por %p161, %p162
      %p164 = scmp.ne.s32.totalorder %s155, %s156
      %p165 = scmp.eq.s32.totalorder %s30, 0
      %p166 = por %p164, %p165
      %p167 = scmp.ne.s32.totalorder %s155, %s156
      %p168 = scmp.eq.s32.totalorder %s31, 1
      %p169 = por %p167, %p168
      %p171 = scmp.ne.s32.totalorder %s156, %s170
      %p172 = scmp.eq.s32.totalorder %s31, 0
      %p173 = por %p171, %p172
      %s175 = sadd.s32 %s174, 1
      %p178 = scmp.eq.s32.totalorder %s25, 1
      %p179 = scmp.ne.s32.totalorder %s174, %s176
      %p180 = scmp.eq.s32.totalorder %s25, 0
      %p181 = por %p179, %p180
      %p182 = scmp.ne.s32.totalorder %s174, %s176
      %p183 = scmp.eq.s32.totalorder %s30, 1
      %p184 = por %p182, %p183
      %p185 = scmp.ne.s32.totalorder %s176, %s177
      %p186 = scmp.eq.s32.totalorder %s30, 0
      %p187 = por %p185, %p186
      %p188 = scmp.ne.s32.totalorder %s176, %s177
      %p189 = scmp.eq.s32.totalorder %s31, 1
      %p190 = por %p188, %p189
      %p192 = scmp.ne.s32.totalorder %s177, %s191
      %p193 = scmp.eq.s32.totalorder %s31, 0
      %p194 = por %p192, %p193
      %s196 = sadd.s32 %s195, 1
      %p199 = scmp.eq.s32.totalorder %s25, 1
      %p200 = scmp.ne.s32.totalorder %s195, %s197
      %p201 = scmp.eq.s32.totalorder %s25, 0
      %p202 = por %p200, %p201
      %p203 = scmp.ne.s32.totalorder %s195, %s197
      %p204 = scmp.eq.s32.totalorder %s30, 1
      %p205 = por %p203, %p204
      %p206 = scmp.ne.s32.totalorder %s197, %s198
      %p207 = scmp.eq.s32.totalorder %s30, 0
      %p208 = por %p206, %p207
      %p209 = scmp.ne.s32.totalorder %s197, %s198
      %p210 = scmp.eq.s32.totalorder %s31, 1
      %p211 = por %p209, %p210
      %p213 = scmp.ne.s32.totalorder %s198, %s212
      %p214 = scmp.eq.s32.totalorder %s31, 0
      %p215 = por %p213, %p214
      %s217 = sadd.s32 %s216, 1
      %p220 = scmp.eq.s32.totalorder %s25, 1
      %p221 = scmp.ne.s32.totalorder %s216, %s218
      %p222 = scmp.eq.s32.totalorder %s25, 0
      %p223 = por %p221, %p222
      %p224 = scmp.ne.s32.totalorder %s216, %s218
      %p225 = scmp.eq.s32.totalorder %s30, 1
      %p226 = por %p224, %p225
      %p227 = scmp.ne.s32.totalorder %s218, %s219
      %p228 = scmp.eq.s32.totalorder %s30, 0
      %p229 = por %p227, %p228
      %p230 = scmp.ne.s32.totalorder %s218, %s219
      %p231 = scmp.eq.s32.totalorder %s31, 1
      %p232 = por %p230, %p231
      %p234 = scmp.ne.s32.totalorder %s219, %s233
      %p235 = scmp.eq.s32.totalorder %s31, 0
      %p236 = por %p234, %p235
      %s238 = sadd.s32 %s237, 1
      %p241 = scmp.eq.s32.totalorder %s25, 1
      %p242 = scmp.ne.s32.totalorder %s237, %s239
      %p243 = scmp.eq.s32.totalorder %s25, 0
      %p244 = por %p242, %p243
      %p245 = scmp.ne.s32.totalorder %s237, %s239
      %p246 = scmp.eq.s32.totalorder %s30, 1
      %p247 = por %p245, %p246
      %p248 = scmp.ne.s32.totalorder %s239, %s240
      %p249 = scmp.eq.s32.totalorder %s30, 0
      %p250 = por %p248, %p249
      %p251 = scmp.ne.s32.totalorder %s239, %s240
      %p252 = scmp.eq.s32.totalorder %s31, 1
      %p253 = por %p251, %p252
      %p255 = scmp.ne.s32.totalorder %s240, %s254
      %p256 = scmp.eq.s32.totalorder %s31, 0
      %p257 = por %p255, %p256
      %s259 = sadd.s32 %s258, 1
      %p262 = scmp.eq.s32.totalorder %s25, 1
      %p263 = scmp.ne.s32.totalorder %s258, %s260
      %p264 = scmp.eq.s32.totalorder %s25, 0
      %p265 = por %p263, %p264
      %p266 = scmp.ne.s32.totalorder %s258, %s260
      %p267 = scmp.eq.s32.totalorder %s30, 1
      %p268 = por %p266, %p267
      %p269 = scmp.ne.s32.totalorder %s260, %s261
      %p270 = scmp.eq.s32.totalorder %s30, 0
      %p271 = por %p269, %p270
      %p272 = scmp.ne.s32.totalorder %s260, %s261
      %p273 = scmp.eq.s32.totalorder %s31, 1
      %p274 = por %p272, %p273
      %p276 = scmp.ne.s32.totalorder %s261, %s275
      %p277 = scmp.eq.s32.totalorder %s31, 0
      %p278 = por %p276, %p277
      %s279 = ssub.s32 %s25, %s32
      %p280 = scmp.eq.s32.totalorder %s279, 0
      %s282 = sadd.s32 %s281, 1
      %s283 = scalar_select %p280, %s281, %s282
      %p286 = pneg %p280
      %p287 = scmp.eq.s32.totalorder %s25, 1
      %p288 = por %p286, %p287
      %p289 = scmp.ne.s32.totalorder %s281, %s284
      %p290 = scmp.eq.s32.totalorder %s25, 0
      %p291 = por %p289, %p290
      %p292 = scmp.ne.s32.totalorder %s281, %s284
      %p293 = scmp.eq.s32.totalorder %s30, 1
      %p294 = por %p292, %p293
      %p295 = scmp.ne.s32.totalorder %s284, %s285
      %p296 = scmp.eq.s32.totalorder %s30, 0
      %p297 = por %p295, %p296
      %p298 = scmp.ne.s32.totalorder %s284, %s285
      %p299 = scmp.eq.s32.totalorder %s31, 1
      %p300 = por %p298, %p299
      %p302 = scmp.ne.s32.totalorder %s285, %s301
      %p303 = scmp.eq.s32.totalorder %s31, 0
      %p304 = por %p302, %p303
      %s305 = ssub.s32 %s25, %s32
      %p306 = scmp.eq.s32.totalorder %s305, 0
      %s308 = sadd.s32 %s307, 1
      %s309 = scalar_select %p306, %s307, %s308
      %p312 = pneg %p306
      %p313 = scmp.eq.s32.totalorder %s25, 1
      %p314 = por %p312, %p313
      %p315 = scmp.ne.s32.totalorder %s307, %s310
      %p316 = scmp.eq.s32.totalorder %s25, 0
      %p317 = por %p315, %p316
      %p318 = scmp.ne.s32.totalorder %s307, %s310
      %p319 = scmp.eq.s32.totalorder %s30, 1
      %p320 = por %p318, %p319
      %p321 = scmp.ne.s32.totalorder %s310, %s311
      %p322 = scmp.eq.s32.totalorder %s30, 0
      %p323 = por %p321, %p322
      %p324 = scmp.ne.s32.totalorder %s310, %s311
      %p325 = scmp.eq.s32.totalorder %s31, 1
      %p326 = por %p324, %p325
      %p328 = scmp.ne.s32.totalorder %s311, %s327
      %p329 = scmp.eq.s32.totalorder %s31, 0
      %p330 = por %p328, %p329
      %p331 = scmp.le.s32.totalorder 1, %s25
      %p332 = scmp.lt.s32.totalorder %s25, 3
      %p333 = pnand %p331, %p332
      %p334 = pneg %p333
      // Predicated region
      $region9: #{tpu_custom_call.1} parent=5 // pred_check
        _
      $region10: #{tpu_custom_call.1} parent=5 // pred_check_branch
        %336 = sbr.rel (%p333) target = $region12
      $region11: #{tpu_custom_call.1} parent=5 // pred_region
        %s337 = ssub.s32 %s25, 1
        // Predicated region
        $region13: #{tpu_custom_call.1} parent=11 // pred_check
          %p338 = pneg %p124
        $region14: #{tpu_custom_call.1} parent=11 // pred_check_branch
          %340 = sbr.rel (%p338) target = $region16
        $region15: #{tpu_custom_call.1} parent=11 // pred_region
          _
        $region16: #{tpu_custom_call.1} parent=11 // pred_fallthru
          _
        // Predicated region
        $region17: #{tpu_custom_call.1} parent=11 // pred_check
          %p341 = pneg %p145
        $region18: #{tpu_custom_call.1} parent=11 // pred_check_branch
          %343 = sbr.rel (%p341) target = $region20
        $region19: #{tpu_custom_call.1} parent=11 // pred_region
          _
        $region20: #{tpu_custom_call.1} parent=11 // pred_fallthru
          _
        // Predicated region
        $region21: #{tpu_custom_call.1} parent=11 // pred_check
          %p344 = pneg %p166
        $region22: #{tpu_custom_call.1} parent=11 // pred_check_branch
          %346 = sbr.rel (%p344) target = $region24
        $region23: #{tpu_custom_call.1} parent=11 // pred_region
          _
        $region24: #{tpu_custom_call.1} parent=11 // pred_fallthru
          _
        // Predicated region
        $region25: #{tpu_custom_call.1} parent=11 // pred_check
          %p347 = pneg %p187
        $region26: #{tpu_custom_call.1} parent=11 // pred_check_branch
          %349 = sbr.rel (%p347) target = $region28
        $region27: #{tpu_custom_call.1} parent=11 // pred_region
          _
        $region28: #{tpu_custom_call.1} parent=11 // pred_fallthru
          _
        // Predicated region
        $region29: #{tpu_custom_call.1} parent=11 // pred_check
          %p350 = pneg %p208
        $region30: #{tpu_custom_call.1} parent=11 // pred_check_branch
          %352 = sbr.rel (%p350) target = $region32
        $region31: #{tpu_custom_call.1} parent=11 // pred_region
          _
        $region32: #{tpu_custom_call.1} parent=11 // pred_fallthru
          _
        // Predicated region
        $region33: #{tpu_custom_call.1} parent=11 // pred_check
          %p353 = pneg %p229
        $region34: #{tpu_custom_call.1} parent=11 // pred_check_branch
          %355 = sbr.rel (%p353) target = $region36
        $region35: #{tpu_custom_call.1} parent=11 // pred_region
          _
        $region36: #{tpu_custom_call.1} parent=11 // pred_fallthru
          _
        // Predicated region
        $region37: #{tpu_custom_call.1} parent=11 // pred_check
          %p356 = pneg %p250
        $region38: #{tpu_custom_call.1} parent=11 // pred_check_branch
          %358 = sbr.rel (%p356) target = $region40
        $region39: #{tpu_custom_call.1} parent=11 // pred_region
          _
        $region40: #{tpu_custom_call.1} parent=11 // pred_fallthru
          _
        // Predicated region
        $region41: #{tpu_custom_call.1} parent=11 // pred_check
          %p359 = pneg %p271
        $region42: #{tpu_custom_call.1} parent=11 // pred_check_branch
          %361 = sbr.rel (%p359) target = $region44
        $region43: #{tpu_custom_call.1} parent=11 // pred_region
          _
        $region44: #{tpu_custom_call.1} parent=11 // pred_fallthru
          _
      $region12: #{tpu_custom_call.1} parent=5 // pred_fallthru
        _
      %p362 = scmp.lt.s32.totalorder %s25, 2
      // Predicated region
      $region45: #{tpu_custom_call.1} parent=5 // pred_check
        %p363 = pneg %p362
      $region46: #{tpu_custom_call.1} parent=5 // pred_check_branch
        %365 = sbr.rel (%p363) target = $region48
      $region47: #{tpu_custom_call.1} parent=5 // pred_region
        // Predicated region
        $region49: #{tpu_custom_call.1} parent=47 // pred_check
          %p366 = pneg %p45
        $region50: #{tpu_custom_call.1} parent=47 // pred_check_branch
          %368 = sbr.rel (%p366) target = $region52
        $region51: #{tpu_custom_call.1} parent=47 // pred_region
          %p369 = scmp.lt.s32.totalorder %s25, 1
          %s370 = scalar_select %p369, %s25, 1
          %s371 = smul.addr %s370, 8
          %s372 = scalar_lea.vmem %s0, %s371
        $region52: #{tpu_custom_call.1} parent=47 // pred_fallthru
          _
        // Predicated region
        $region53: #{tpu_custom_call.1} parent=47 // pred_check
          %p373 = pneg %p71
        $region54: #{tpu_custom_call.1} parent=47 // pred_check_branch
          %375 = sbr.rel (%p373) target = $region56
        $region55: #{tpu_custom_call.1} parent=47 // pred_region
          %p376 = scmp.lt.s32.totalorder %s25, 1
          %s377 = scalar_select %p376, %s25, 1
          %s378 = smul.addr %s377, 8
          %s379 = scalar_lea.vmem %s1, %s378
        $region56: #{tpu_custom_call.1} parent=47 // pred_fallthru
          _
        // Predicated region
        $region57: #{tpu_custom_call.1} parent=47 // pred_check
          %p380 = pneg %p97
        $region58: #{tpu_custom_call.1} parent=47 // pred_check_branch
          %382 = sbr.rel (%p380) target = $region60
        $region59: #{tpu_custom_call.1} parent=47 // pred_region
          %p383 = scmp.lt.s32.totalorder %s25, 1
          %s384 = scalar_select %p383, %s25, 1
          %s385 = smul.addr %s384, 8
          %s386 = scalar_lea.vmem %s2, %s385
        $region60: #{tpu_custom_call.1} parent=47 // pred_fallthru
          _
      $region48: #{tpu_custom_call.1} parent=5 // pred_fallthru
        _
      %p387 = scmp.le.s32.totalorder 1, %s25
      %p388 = scmp.lt.s32.totalorder %s25, 3
      %p389 = pnand %p387, %p388
      %p390 = pneg %p389
      // Predicated region
      $region61: #{tpu_custom_call.1} parent=5 // pred_check
        _
      $region62: #{tpu_custom_call.1} parent=5 // pred_check_branch
        %392 = sbr.rel (%p389) target = $region64
      $region63: #{tpu_custom_call.1} parent=5 // pred_region
        %s393 = ssub.s32 %s25, 1
        %p394 = scmp.lt.s32.totalorder %s30, 1
        %s395 = scalar_select %p394, %s30, 1
        %s396 = smul.addr %s395, 8
        %s397 = scalar_lea.vmem %s0, %s396
        %p398 = pneg %p51
        %p399 = pneg %p48
        %p400 = scmp.lt.s32.totalorder %s30, 1
        %s401 = scalar_select %p400, %s30, 1
        %s402 = smul.addr %s401, 8
        %s403 = scalar_lea.vmem %s1, %s402
        %p404 = pneg %p77
        %p405 = pneg %p74
        %p406 = scmp.lt.s32.totalorder %s30, 1
        %s407 = scalar_select %p406, %s30, 1
        %s408 = smul.addr %s407, 8
        %s409 = scalar_lea.vmem %s2, %s408
        %p410 = pneg %p103
        %p411 = pneg %p100
        %p412 = pneg %p124
        %p413 = pneg %p121
        %p414 = pneg %p145
        %p415 = pneg %p142
        %p416 = pneg %p166
        %p417 = pneg %p163
        %p418 = pneg %p187
        %p419 = pneg %p184
        %p420 = pneg %p208
        %p421 = pneg %p205
        %p422 = pneg %p229
        %p423 = pneg %p226
        %p424 = pneg %p250
        %p425 = pneg %p247
        %p426 = pneg %p271
        %p427 = pneg %p268
        %p428 = pneg %p297
        %p429 = pneg %p294
        %s430 = sand.u32 %s284, 1
        %s431 = scalar_lea.sflag [#allocation3], %s430
        %s432 = sand.u32 %s284, 1
        %s433 = smul.addr %s432, 8
        %s434 = scalar_lea.vmem [#allocation2], %s433
        %p435 = pneg %p323
        %p436 = pneg %p320
        %s437 = sand.u32 %s310, 1
        %s438 = scalar_lea.sflag [#allocation5], %s437
        %s439 = sand.u32 %s310, 1
        %s440 = smul.addr %s439, 64
        %s441 = scalar_lea.vmem [#allocation4], %s440
        %p442 = scmp.lt.s32.totalorder %s30, 1
        %s443 = scalar_select %p442, %s30, 1
        %s444 = smul.addr %s443, 8
        %s445 = scalar_lea.vmem %s0, %s444
        %p446 = scmp.lt.s32.totalorder %s30, 1
        %s447 = scalar_select %p446, %s30, 1
        %s448 = smul.addr %s447, 8
        %s449 = scalar_lea.vmem %s1, %s448
        %p450 = scmp.lt.s32.totalorder %s30, 1
        %s451 = scalar_select %p450, %s30, 1
        %s452 = smul.addr %s451, 8
        %s453 = scalar_lea.vmem %s2, %s452
        %v454 = vld [vmem:[%s445] sm:$0xff]
        %v455 = vld [vmem:[%s449] sm:$0xff]
        %v456 = vld [vmem:[%s453] sm:$0xff]
        %v457 = vld [vmem:[%s3] sm:$0xff]
        %v458 = vld [vmem:[%s3 + $0x8] sm:$0xff]
        %v459 = vld [vmem:[%s3 + $0x10] sm:$0xff]
        %v460 = vld [vmem:[%s3 + $0x18] sm:$0xff]
        %v461 = vld [vmem:[%s3 + $0x20] sm:$0xff]
        %v462 = vld [vmem:[%s3 + $0x28] sm:$0xff]
        %v463 = vld [vmem:[%s3 + $0x30] sm:$0xff]
        %v464 = vld [vmem:[%s3 + $0x38] sm:$0xff]
        %v465 = vld [vmem:[%s3 + $0x40] sm:$0xff]
        %v466 = vld [vmem:[%s3 + $0x48] sm:$0xff]
        %v467 = vld [vmem:[%s3 + $0x50] sm:$0xff]
        %v468 = vld [vmem:[%s3 + $0x58] sm:$0xff]
        %v469 = vld [vmem:[%s3 + $0x60] sm:$0xff]
        %v470 = vld [vmem:[%s3 + $0x68] sm:$0xff]
        %v471 = vld [vmem:[%s3 + $0x70] sm:$0xff]
        %v472 = vld [vmem:[%s3 + $0x78] sm:$0xff]
        %v473 = vld [vmem:[%s3 + $0x80] sm:$0xff]
        %v474 = vld [vmem:[%s3 + $0x88] sm:$0xff]
        %v475 = vld [vmem:[%s3 + $0x90] sm:$0xff]
        %v476 = vld [vmem:[%s3 + $0x98] sm:$0xff]
        %v477 = vld [vmem:[%s3 + $0xa0] sm:$0xff]
        %v478 = vld [vmem:[%s3 + $0xa8] sm:$0xff]
        %v479 = vld [vmem:[%s3 + $0xb0] sm:$0xff]
        %v480 = vld [vmem:[%s3 + $0xb8] sm:$0xff]
        %v481 = vld [vmem:[%s3 + $0xc0] sm:$0xff]
        %v482 = vld [vmem:[%s3 + $0xc8] sm:$0xff]
        %v483 = vld [vmem:[%s3 + $0xd0] sm:$0xff]
        %v484 = vld [vmem:[%s3 + $0xd8] sm:$0xff]
        %v485 = vld [vmem:[%s3 + $0xe0] sm:$0xff]
        %v486 = vld [vmem:[%s3 + $0xe8] sm:$0xff]
        %v487 = vld [vmem:[%s3 + $0xf0] sm:$0xff]
        %v488 = vld [vmem:[%s3 + $0xf8] sm:$0xff]
        %v489 = vld [vmem:[%s4] sm:$0xff]
        %v490 = vld [vmem:[%s4 + $0x8] sm:$0xff]
        %v491 = vld [vmem:[%s4 + $0x10] sm:$0xff]
        %v492 = vld [vmem:[%s4 + $0x18] sm:$0xff]
        %v493 = vld [vmem:[%s4 + $0x20] sm:$0xff]
        %v494 = vld [vmem:[%s4 + $0x28] sm:$0xff]
        %v495 = vld [vmem:[%s4 + $0x30] sm:$0xff]
        %v496 = vld [vmem:[%s4 + $0x38] sm:$0xff]
        %v497 = vld [vmem:[%s4 + $0x40] sm:$0xff]
        %v498 = vld [vmem:[%s4 + $0x48] sm:$0xff]
        %v499 = vld [vmem:[%s4 + $0x50] sm:$0xff]
        %v500 = vld [vmem:[%s4 + $0x58] sm:$0xff]
        %v501 = vld [vmem:[%s4 + $0x60] sm:$0xff]
        %v502 = vld [vmem:[%s4 + $0x68] sm:$0xff]
        %v503 = vld [vmem:[%s4 + $0x70] sm:$0xff]
        %v504 = vld [vmem:[%s4 + $0x78] sm:$0xff]
        %v505 = vld [vmem:[%s4 + $0x80] sm:$0xff]
        %v506 = vld [vmem:[%s4 + $0x88] sm:$0xff]
        %v507 = vld [vmem:[%s4 + $0x90] sm:$0xff]
        %v508 = vld [vmem:[%s4 + $0x98] sm:$0xff]
        %v509 = vld [vmem:[%s4 + $0xa0] sm:$0xff]
        %v510 = vld [vmem:[%s4 + $0xa8] sm:$0xff]
        %v511 = vld [vmem:[%s4 + $0xb0] sm:$0xff]
        %v512 = vld [vmem:[%s4 + $0xb8] sm:$0xff]
        %v513 = vld [vmem:[%s4 + $0xc0] sm:$0xff]
        %v514 = vld [vmem:[%s4 + $0xc8] sm:$0xff]
        %v515 = vld [vmem:[%s4 + $0xd0] sm:$0xff]
        %v516 = vld [vmem:[%s4 + $0xd8] sm:$0xff]
        %v517 = vld [vmem:[%s4 + $0xe0] sm:$0xff]
        %v518 = vld [vmem:[%s4 + $0xe8] sm:$0xff]
        %v519 = vld [vmem:[%s4 + $0xf0] sm:$0xff]
        %v520 = vld [vmem:[%s4 + $0xf8] sm:$0xff]
        %v521 = vld [vmem:[%s5] sm:$0xff]
        %v522 = vld [vmem:[%s5 + $0x8] sm:$0xff]
        %v523 = vld [vmem:[%s5 + $0x10] sm:$0xff]
        %v524 = vld [vmem:[%s5 + $0x18] sm:$0xff]
        %v525 = vld [vmem:[%s5 + $0x20] sm:$0xff]
        %v526 = vld [vmem:[%s5 + $0x28] sm:$0xff]
        %v527 = vld [vmem:[%s5 + $0x30] sm:$0xff]
        %v528 = vld [vmem:[%s5 + $0x38] sm:$0xff]
        %v529 = vld [vmem:[%s5 + $0x40] sm:$0xff]
        %v530 = vld [vmem:[%s5 + $0x48] sm:$0xff]
        %v531 = vld [vmem:[%s5 + $0x50] sm:$0xff]
        %v532 = vld [vmem:[%s5 + $0x58] sm:$0xff]
        %v533 = vld [vmem:[%s5 + $0x60] sm:$0xff]
        %v534 = vld [vmem:[%s5 + $0x68] sm:$0xff]
        %v535 = vld [vmem:[%s5 + $0x70] sm:$0xff]
        %v536 = vld [vmem:[%s5 + $0x78] sm:$0xff]
        %v537 = vld [vmem:[%s5 + $0x80] sm:$0xff]
        %v538 = vld [vmem:[%s5 + $0x88] sm:$0xff]
        %v539 = vld [vmem:[%s5 + $0x90] sm:$0xff]
        %v540 = vld [vmem:[%s5 + $0x98] sm:$0xff]
        %v541 = vld [vmem:[%s5 + $0xa0] sm:$0xff]
        %v542 = vld [vmem:[%s5 + $0xa8] sm:$0xff]
        %v543 = vld [vmem:[%s5 + $0xb0] sm:$0xff]
        %v544 = vld [vmem:[%s5 + $0xb8] sm:$0xff]
        %v545 = vld [vmem:[%s5 + $0xc0] sm:$0xff]
        %v546 = vld [vmem:[%s5 + $0xc8] sm:$0xff]
        %v547 = vld [vmem:[%s5 + $0xd0] sm:$0xff]
        %v548 = vld [vmem:[%s5 + $0xd8] sm:$0xff]
        %v549 = vld [vmem:[%s5 + $0xe0] sm:$0xff]
        %v550 = vld [vmem:[%s5 + $0xe8] sm:$0xff]
        %v551 = vld [vmem:[%s5 + $0xf0] sm:$0xff]
        %v552 = vld [vmem:[%s5 + $0xf8] sm:$0xff]
        %v553 = vld [vmem:[%s6] sm:$0xff]
        %v555 = vrot.slane %v553, 1
        %v556 = vrot.slane %v553, 2
        %v557 = vrot.slane %v553, 3
        %v558 = vrot.slane %v553, 4
        %v559 = vrot.slane %v553, 5
        %v560 = vrot.slane %v553, 6
        %v561 = vrot.slane %v553, 7
        %v562 = vperm.slane %v553, 0
        %v563 = vperm.slane %v555, 0
        %v564 = vperm.slane %v556, 0
        %v565 = vperm.slane %v557, 0
        %v566 = vperm.slane %v558, 0
        %v567 = vperm.slane %v559, 0
        %v568 = vperm.slane %v560, 0
        %v569 = vperm.slane %v561, 0
        %vm578 = vcmask 261120
        %v580 = vsel %vm578, %v454, 0
        %582 = vmatpush.msra.mxu0 0.0
        %583 = vmatpush.msra.mxu0 0.0
        %584 = vmatpush.msra.mxu0 0.0
        %585 = vmatpush.msra.mxu0 0.0
        %586 = vmatpush.msra.mxu0 0.0
        %587 = vmatpush.msra.mxu0 0.0
        %588 = vmatpush.msra.mxu0 0.0
        %589 = vmatpush.msra.mxu0 0.0
        %590 = vmatpush.msra.mxu0 0.0
        %591 = vmatpush.msra.mxu0 0.0
        %592 = vmatpush.msra.mxu0 0.0
        %593 = vmatpush.msra.mxu0 0.0
        %594 = vmatpush.msra.mxu0 %v460
        %595 = vmatpush.msra.mxu0 %v459
        %596 = vmatpush.msra.mxu0 %v458
        %597 = vmatpush.msra.mxu0 %v457
        %598 = vmatmul.f32.gmra.mxu0 %v580
        %v599 = vpop.f32.mrf.mxu0
        %v600 = vadd.f32 %v562, %v599
        %601 = vdwg.mxu0
        %602 = vmatpush.msra.mxu0 0.0
        %603 = vmatpush.msra.mxu0 0.0
        %604 = vmatpush.msra.mxu0 0.0
        %605 = vmatpush.msra.mxu0 0.0
        %606 = vmatpush.msra.mxu0 0.0
        %607 = vmatpush.msra.mxu0 0.0
        %608 = vmatpush.msra.mxu0 0.0
        %609 = vmatpush.msra.mxu0 0.0
        %610 = vmatpush.msra.mxu0 0.0
        %611 = vmatpush.msra.mxu0 0.0
        %612 = vmatpush.msra.mxu0 0.0
        %613 = vmatpush.msra.mxu0 0.0
        %614 = vmatpush.msra.mxu0 %v464
        %615 = vmatpush.msra.mxu0 %v463
        %616 = vmatpush.msra.mxu0 %v462
        %617 = vmatpush.msra.mxu0 %v461
        %618 = vmatmul.f32.gmra.mxu0 %v580
        %v619 = vpop.f32.mrf.mxu0
        %v620 = vadd.f32 %v563, %v619
        %621 = vdwg.mxu0
        %622 = vmatpush.msra.mxu0 0.0
        %623 = vmatpush.msra.mxu0 0.0
        %624 = vmatpush.msra.mxu0 0.0
        %625 = vmatpush.msra.mxu0 0.0
        %626 = vmatpush.msra.mxu0 0.0
        %627 = vmatpush.msra.mxu0 0.0
        %628 = vmatpush.msra.mxu0 0.0
        %629 = vmatpush.msra.mxu0 0.0
        %630 = vmatpush.msra.mxu0 0.0
        %631 = vmatpush.msra.mxu0 0.0
        %632 = vmatpush.msra.mxu0 0.0
        %633 = vmatpush.msra.mxu0 0.0
        %634 = vmatpush.msra.mxu0 %v468
        %635 = vmatpush.msra.mxu0 %v467
        %636 = vmatpush.msra.mxu0 %v466
        %637 = vmatpush.msra.mxu0 %v465
        %638 = vmatmul.f32.gmra.mxu0 %v580
        %v639 = vpop.f32.mrf.mxu0
        %v640 = vadd.f32 %v564, %v639
        %641 = vdwg.mxu0
        %642 = vmatpush.msra.mxu0 0.0
        %643 = vmatpush.msra.mxu0 0.0
        %644 = vmatpush.msra.mxu0 0.0
        %645 = vmatpush.msra.mxu0 0.0
        %646 = vmatpush.msra.mxu0 0.0
        %647 = vmatpush.msra.mxu0 0.0
        %648 = vmatpush.msra.mxu0 0.0
        %649 = vmatpush.msra.mxu0 0.0
        %650 = vmatpush.msra.mxu0 0.0
        %651 = vmatpush.msra.mxu0 0.0
        %652 = vmatpush.msra.mxu0 0.0
        %653 = vmatpush.msra.mxu0 0.0
        %654 = vmatpush.msra.mxu0 %v472
        %655 = vmatpush.msra.mxu0 %v471
        %656 = vmatpush.msra.mxu0 %v470
        %657 = vmatpush.msra.mxu0 %v469
        %658 = vmatmul.f32.gmra.mxu0 %v580
        %v659 = vpop.f32.mrf.mxu0
        %v660 = vadd.f32 %v565, %v659
        %661 = vdwg.mxu0
        %662 = vmatpush.msra.mxu0 0.0
        %663 = vmatpush.msra.mxu0 0.0
        %664 = vmatpush.msra.mxu0 0.0
        %665 = vmatpush.msra.mxu0 0.0
        %666 = vmatpush.msra.mxu0 0.0
        %667 = vmatpush.msra.mxu0 0.0
        %668 = vmatpush.msra.mxu0 0.0
        %669 = vmatpush.msra.mxu0 0.0
        %670 = vmatpush.msra.mxu0 0.0
        %671 = vmatpush.msra.mxu0 0.0
        %672 = vmatpush.msra.mxu0 0.0
        %673 = vmatpush.msra.mxu0 0.0
        %674 = vmatpush.msra.mxu0 %v476
        %675 = vmatpush.msra.mxu0 %v475
        %676 = vmatpush.msra.mxu0 %v474
        %677 = vmatpush.msra.mxu0 %v473
        %678 = vmatmul.f32.gmra.mxu0 %v580
        %v679 = vpop.f32.mrf.mxu0
        %v680 = vadd.f32 %v566, %v679
        %681 = vdwg.mxu0
        %682 = vmatpush.msra.mxu0 0.0
        %683 = vmatpush.msra.mxu0 0.0
        %684 = vmatpush.msra.mxu0 0.0
        %685 = vmatpush.msra.mxu0 0.0
        %686 = vmatpush.msra.mxu0 0.0
        %687 = vmatpush.msra.mxu0 0.0
        %688 = vmatpush.msra.mxu0 0.0
        %689 = vmatpush.msra.mxu0 0.0
        %690 = vmatpush.msra.mxu0 0.0
        %691 = vmatpush.msra.mxu0 0.0
        %692 = vmatpush.msra.mxu0 0.0
        %693 = vmatpush.msra.mxu0 0.0
        %694 = vmatpush.msra.mxu0 %v480
        %695 = vmatpush.msra.mxu0 %v479
        %696 = vmatpush.msra.mxu0 %v478
        %697 = vmatpush.msra.mxu0 %v477
        %698 = vmatmul.f32.gmra.mxu0 %v580
        %v699 = vpop.f32.mrf.mxu0
        %v700 = vadd.f32 %v567, %v699
        %701 = vdwg.mxu0
        %702 = vmatpush.msra.mxu0 0.0
        %703 = vmatpush.msra.mxu0 0.0
        %704 = vmatpush.msra.mxu0 0.0
        %705 = vmatpush.msra.mxu0 0.0
        %706 = vmatpush.msra.mxu0 0.0
        %707 = vmatpush.msra.mxu0 0.0
        %708 = vmatpush.msra.mxu0 0.0
        %709 = vmatpush.msra.mxu0 0.0
        %710 = vmatpush.msra.mxu0 0.0
        %711 = vmatpush.msra.mxu0 0.0
        %712 = vmatpush.msra.mxu0 0.0
        %713 = vmatpush.msra.mxu0 0.0
        %714 = vmatpush.msra.mxu0 %v484
        %715 = vmatpush.msra.mxu0 %v483
        %716 = vmatpush.msra.mxu0 %v482
        %717 = vmatpush.msra.mxu0 %v481
        %718 = vmatmul.f32.gmra.mxu0 %v580
        %v719 = vpop.f32.mrf.mxu0
        %v720 = vadd.f32 %v568, %v719
        %721 = vdwg.mxu0
        %722 = vmatpush.msra.mxu0 0.0
        %723 = vmatpush.msra.mxu0 0.0
        %724 = vmatpush.msra.mxu0 0.0
        %725 = vmatpush.msra.mxu0 0.0
        %726 = vmatpush.msra.mxu0 0.0
        %727 = vmatpush.msra.mxu0 0.0
        %728 = vmatpush.msra.mxu0 0.0
        %729 = vmatpush.msra.mxu0 0.0
        %730 = vmatpush.msra.mxu0 0.0
        %731 = vmatpush.msra.mxu0 0.0
        %732 = vmatpush.msra.mxu0 0.0
        %733 = vmatpush.msra.mxu0 0.0
        %734 = vmatpush.msra.mxu0 %v488
        %735 = vmatpush.msra.mxu0 %v487
        %736 = vmatpush.msra.mxu0 %v486
        %737 = vmatpush.msra.mxu0 %v485
        %738 = vmatmul.f32.gmra.mxu0 %v580
        %v739 = vpop.f32.mrf.mxu0
        %v740 = vadd.f32 %v569, %v739
        %741 = vdwg.mxu0
        %v742 = vld [vmem:[%s7] sm:$0xff]
        %v744 = vrot.slane %v742, 1
        %v745 = vrot.slane %v742, 2
        %v746 = vrot.slane %v742, 3
        %v747 = vrot.slane %v742, 4
        %v748 = vrot.slane %v742, 5
        %v749 = vrot.slane %v742, 6
        %v750 = vrot.slane %v742, 7
        %v751 = vperm.slane %v742, 0
        %v752 = vperm.slane %v744, 0
        %v753 = vperm.slane %v745, 0
        %v754 = vperm.slane %v746, 0
        %v755 = vperm.slane %v747, 0
        %v756 = vperm.slane %v748, 0
        %v757 = vperm.slane %v749, 0
        %v758 = vperm.slane %v750, 0
        %v768 = vsel %vm578, %v455, 0
        %770 = vmatpush.msra.mxu0 0.0
        %771 = vmatpush.msra.mxu0 0.0
        %772 = vmatpush.msra.mxu0 0.0
        %773 = vmatpush.msra.mxu0 0.0
        %774 = vmatpush.msra.mxu0 0.0
        %775 = vmatpush.msra.mxu0 0.0
        %776 = vmatpush.msra.mxu0 0.0
        %777 = vmatpush.msra.mxu0 0.0
        %778 = vmatpush.msra.mxu0 0.0
        %779 = vmatpush.msra.mxu0 0.0
        %780 = vmatpush.msra.mxu0 0.0
        %781 = vmatpush.msra.mxu0 0.0
        %782 = vmatpush.msra.mxu0 %v492
        %783 = vmatpush.msra.mxu0 %v491
        %784 = vmatpush.msra.mxu0 %v490
        %785 = vmatpush.msra.mxu0 %v489
        %786 = vmatmul.f32.gmra.mxu0 %v768
        %v787 = vpop.f32.mrf.mxu0
        %v788 = vadd.f32 %v751, %v787
        %789 = vdwg.mxu0
        %790 = vmatpush.msra.mxu0 0.0
        %791 = vmatpush.msra.mxu0 0.0
        %792 = vmatpush.msra.mxu0 0.0
        %793 = vmatpush.msra.mxu0 0.0
        %794 = vmatpush.msra.mxu0 0.0
        %795 = vmatpush.msra.mxu0 0.0
        %796 = vmatpush.msra.mxu0 0.0
        %797 = vmatpush.msra.mxu0 0.0
        %798 = vmatpush.msra.mxu0 0.0
        %799 = vmatpush.msra.mxu0 0.0
        %800 = vmatpush.msra.mxu0 0.0
        %801 = vmatpush.msra.mxu0 0.0
        %802 = vmatpush.msra.mxu0 %v496
        %803 = vmatpush.msra.mxu0 %v495
        %804 = vmatpush.msra.mxu0 %v494
        %805 = vmatpush.msra.mxu0 %v493
        %806 = vmatmul.f32.gmra.mxu0 %v768
        %v807 = vpop.f32.mrf.mxu0
        %v808 = vadd.f32 %v752, %v807
        %809 = vdwg.mxu0
        %810 = vmatpush.msra.mxu0 0.0
        %811 = vmatpush.msra.mxu0 0.0
        %812 = vmatpush.msra.mxu0 0.0
        %813 = vmatpush.msra.mxu0 0.0
        %814 = vmatpush.msra.mxu0 0.0
        %815 = vmatpush.msra.mxu0 0.0
        %816 = vmatpush.msra.mxu0 0.0
        %817 = vmatpush.msra.mxu0 0.0
        %818 = vmatpush.msra.mxu0 0.0
        %819 = vmatpush.msra.mxu0 0.0
        %820 = vmatpush.msra.mxu0 0.0
        %821 = vmatpush.msra.mxu0 0.0
        %822 = vmatpush.msra.mxu0 %v500
        %823 = vmatpush.msra.mxu0 %v499
        %824 = vmatpush.msra.mxu0 %v498
        %825 = vmatpush.msra.mxu0 %v497
        %826 = vmatmul.f32.gmra.mxu0 %v768
        %v827 = vpop.f32.mrf.mxu0
        %v828 = vadd.f32 %v753, %v827
        %829 = vdwg.mxu0
        %830 = vmatpush.msra.mxu0 0.0
        %831 = vmatpush.msra.mxu0 0.0
        %832 = vmatpush.msra.mxu0 0.0
        %833 = vmatpush.msra.mxu0 0.0
        %834 = vmatpush.msra.mxu0 0.0
        %835 = vmatpush.msra.mxu0 0.0
        %836 = vmatpush.msra.mxu0 0.0
        %837 = vmatpush.msra.mxu0 0.0
        %838 = vmatpush.msra.mxu0 0.0
        %839 = vmatpush.msra.mxu0 0.0
        %840 = vmatpush.msra.mxu0 0.0
        %841 = vmatpush.msra.mxu0 0.0
        %842 = vmatpush.msra.mxu0 %v504
        %843 = vmatpush.msra.mxu0 %v503
        %844 = vmatpush.msra.mxu0 %v502
        %845 = vmatpush.msra.mxu0 %v501
        %846 = vmatmul.f32.gmra.mxu0 %v768
        %v847 = vpop.f32.mrf.mxu0
        %v848 = vadd.f32 %v754, %v847
        %849 = vdwg.mxu0
        %850 = vmatpush.msra.mxu0 0.0
        %851 = vmatpush.msra.mxu0 0.0
        %852 = vmatpush.msra.mxu0 0.0
        %853 = vmatpush.msra.mxu0 0.0
        %854 = vmatpush.msra.mxu0 0.0
        %855 = vmatpush.msra.mxu0 0.0
        %856 = vmatpush.msra.mxu0 0.0
        %857 = vmatpush.msra.mxu0 0.0
        %858 = vmatpush.msra.mxu0 0.0
        %859 = vmatpush.msra.mxu0 0.0
        %860 = vmatpush.msra.mxu0 0.0
        %861 = vmatpush.msra.mxu0 0.0
        %862 = vmatpush.msra.mxu0 %v508
        %863 = vmatpush.msra.mxu0 %v507
        %864 = vmatpush.msra.mxu0 %v506
        %865 = vmatpush.msra.mxu0 %v505
        %866 = vmatmul.f32.gmra.mxu0 %v768
        %v867 = vpop.f32.mrf.mxu0
        %v868 = vadd.f32 %v755, %v867
        %869 = vdwg.mxu0
        %870 = vmatpush.msra.mxu0 0.0
        %871 = vmatpush.msra.mxu0 0.0
        %872 = vmatpush.msra.mxu0 0.0
        %873 = vmatpush.msra.mxu0 0.0
        %874 = vmatpush.msra.mxu0 0.0
        %875 = vmatpush.msra.mxu0 0.0
        %876 = vmatpush.msra.mxu0 0.0
        %877 = vmatpush.msra.mxu0 0.0
        %878 = vmatpush.msra.mxu0 0.0
        %879 = vmatpush.msra.mxu0 0.0
        %880 = vmatpush.msra.mxu0 0.0
        %881 = vmatpush.msra.mxu0 0.0
        %882 = vmatpush.msra.mxu0 %v512
        %883 = vmatpush.msra.mxu0 %v511
        %884 = vmatpush.msra.mxu0 %v510
        %885 = vmatpush.msra.mxu0 %v509
        %886 = vmatmul.f32.gmra.mxu0 %v768
        %v887 = vpop.f32.mrf.mxu0
        %v888 = vadd.f32 %v756, %v887
        %889 = vdwg.mxu0
        %890 = vmatpush.msra.mxu0 0.0
        %891 = vmatpush.msra.mxu0 0.0
        %892 = vmatpush.msra.mxu0 0.0
        %893 = vmatpush.msra.mxu0 0.0
        %894 = vmatpush.msra.mxu0 0.0
        %895 = vmatpush.msra.mxu0 0.0
        %896 = vmatpush.msra.mxu0 0.0
        %897 = vmatpush.msra.mxu0 0.0
        %898 = vmatpush.msra.mxu0 0.0
        %899 = vmatpush.msra.mxu0 0.0
        %900 = vmatpush.msra.mxu0 0.0
        %901 = vmatpush.msra.mxu0 0.0
        %902 = vmatpush.msra.mxu0 %v516
        %903 = vmatpush.msra.mxu0 %v515
        %904 = vmatpush.msra.mxu0 %v514
        %905 = vmatpush.msra.mxu0 %v513
        %906 = vmatmul.f32.gmra.mxu0 %v768
        %v907 = vpop.f32.mrf.mxu0
        %v908 = vadd.f32 %v757, %v907
        %909 = vdwg.mxu0
        %910 = vmatpush.msra.mxu0 0.0
        %911 = vmatpush.msra.mxu0 0.0
        %912 = vmatpush.msra.mxu0 0.0
        %913 = vmatpush.msra.mxu0 0.0
        %914 = vmatpush.msra.mxu0 0.0
        %915 = vmatpush.msra.mxu0 0.0
        %916 = vmatpush.msra.mxu0 0.0
        %917 = vmatpush.msra.mxu0 0.0
        %918 = vmatpush.msra.mxu0 0.0
        %919 = vmatpush.msra.mxu0 0.0
        %920 = vmatpush.msra.mxu0 0.0
        %921 = vmatpush.msra.mxu0 0.0
        %922 = vmatpush.msra.mxu0 %v520
        %923 = vmatpush.msra.mxu0 %v519
        %924 = vmatpush.msra.mxu0 %v518
        %925 = vmatpush.msra.mxu0 %v517
        %926 = vmatmul.f32.gmra.mxu0 %v768
        %v927 = vpop.f32.mrf.mxu0
        %v928 = vadd.f32 %v758, %v927
        %929 = vdwg.mxu0
        %v930 = vld [vmem:[%s8] sm:$0xff]
        %v932 = vrot.slane %v930, 1
        %v933 = vrot.slane %v930, 2
        %v934 = vrot.slane %v930, 3
        %v935 = vrot.slane %v930, 4
        %v936 = vrot.slane %v930, 5
        %v937 = vrot.slane %v930, 6
        %v938 = vrot.slane %v930, 7
        %v939 = vperm.slane %v930, 0
        %v940 = vperm.slane %v932, 0
        %v941 = vperm.slane %v933, 0
        %v942 = vperm.slane %v934, 0
        %v943 = vperm.slane %v935, 0
        %v944 = vperm.slane %v936, 0
        %v945 = vperm.slane %v937, 0
        %v946 = vperm.slane %v938, 0
        %v956 = vsel %vm578, %v456, 0
        %958 = vmatpush.msra.mxu0 0.0
        %959 = vmatpush.msra.mxu0 0.0
        %960 = vmatpush.msra.mxu0 0.0
        %961 = vmatpush.msra.mxu0 0.0
        %962 = vmatpush.msra.mxu0 0.0
        %963 = vmatpush.msra.mxu0 0.0
        %964 = vmatpush.msra.mxu0 0.0
        %965 = vmatpush.msra.mxu0 0.0
        %966 = vmatpush.msra.mxu0 0.0
        %967 = vmatpush.msra.mxu0 0.0
        %968 = vmatpush.msra.mxu0 0.0
        %969 = vmatpush.msra.mxu0 0.0
        %970 = vmatpush.msra.mxu0 %v524
        %971 = vmatpush.msra.mxu0 %v523
        %972 = vmatpush.msra.mxu0 %v522
        %973 = vmatpush.msra.mxu0 %v521
        %974 = vmatmul.f32.gmra.mxu0 %v956
        %v975 = vpop.f32.mrf.mxu0
        %v976 = vadd.f32 %v939, %v975
        %977 = vdwg.mxu0
        %978 = vmatpush.msra.mxu0 0.0
        %979 = vmatpush.msra.mxu0 0.0
        %980 = vmatpush.msra.mxu0 0.0
        %981 = vmatpush.msra.mxu0 0.0
        %982 = vmatpush.msra.mxu0 0.0
        %983 = vmatpush.msra.mxu0 0.0
        %984 = vmatpush.msra.mxu0 0.0
        %985 = vmatpush.msra.mxu0 0.0
        %986 = vmatpush.msra.mxu0 0.0
        %987 = vmatpush.msra.mxu0 0.0
        %988 = vmatpush.msra.mxu0 0.0
        %989 = vmatpush.msra.mxu0 0.0
        %990 = vmatpush.msra.mxu0 %v528
        %991 = vmatpush.msra.mxu0 %v527
        %992 = vmatpush.msra.mxu0 %v526
        %993 = vmatpush.msra.mxu0 %v525
        %994 = vmatmul.f32.gmra.mxu0 %v956
        %v995 = vpop.f32.mrf.mxu0
        %v996 = vadd.f32 %v940, %v995
        %997 = vdwg.mxu0
        %998 = vmatpush.msra.mxu0 0.0
        %999 = vmatpush.msra.mxu0 0.0
        %1000 = vmatpush.msra.mxu0 0.0
        %1001 = vmatpush.msra.mxu0 0.0
        %1002 = vmatpush.msra.mxu0 0.0
        %1003 = vmatpush.msra.mxu0 0.0
        %1004 = vmatpush.msra.mxu0 0.0
        %1005 = vmatpush.msra.mxu0 0.0
        %1006 = vmatpush.msra.mxu0 0.0
        %1007 = vmatpush.msra.mxu0 0.0
        %1008 = vmatpush.msra.mxu0 0.0
        %1009 = vmatpush.msra.mxu0 0.0
        %1010 = vmatpush.msra.mxu0 %v532
        %1011 = vmatpush.msra.mxu0 %v531
        %1012 = vmatpush.msra.mxu0 %v530
        %1013 = vmatpush.msra.mxu0 %v529
        %1014 = vmatmul.f32.gmra.mxu0 %v956
        %v1015 = vpop.f32.mrf.mxu0
        %v1016 = vadd.f32 %v941, %v1015
        %1017 = vdwg.mxu0
        %1018 = vmatpush.msra.mxu0 0.0
        %1019 = vmatpush.msra.mxu0 0.0
        %1020 = vmatpush.msra.mxu0 0.0
        %1021 = vmatpush.msra.mxu0 0.0
        %1022 = vmatpush.msra.mxu0 0.0
        %1023 = vmatpush.msra.mxu0 0.0
        %1024 = vmatpush.msra.mxu0 0.0
        %1025 = vmatpush.msra.mxu0 0.0
        %1026 = vmatpush.msra.mxu0 0.0
        %1027 = vmatpush.msra.mxu0 0.0
        %1028 = vmatpush.msra.mxu0 0.0
        %1029 = vmatpush.msra.mxu0 0.0
        %1030 = vmatpush.msra.mxu0 %v536
        %1031 = vmatpush.msra.mxu0 %v535
        %1032 = vmatpush.msra.mxu0 %v534
        %1033 = vmatpush.msra.mxu0 %v533
        %1034 = vmatmul.f32.gmra.mxu0 %v956
        %v1035 = vpop.f32.mrf.mxu0
        %v1036 = vadd.f32 %v942, %v1035
        %1037 = vdwg.mxu0
        %1038 = vmatpush.msra.mxu0 0.0
        %1039 = vmatpush.msra.mxu0 0.0
        %1040 = vmatpush.msra.mxu0 0.0
        %1041 = vmatpush.msra.mxu0 0.0
        %1042 = vmatpush.msra.mxu0 0.0
        %1043 = vmatpush.msra.mxu0 0.0
        %1044 = vmatpush.msra.mxu0 0.0
        %1045 = vmatpush.msra.mxu0 0.0
        %1046 = vmatpush.msra.mxu0 0.0
        %1047 = vmatpush.msra.mxu0 0.0
        %1048 = vmatpush.msra.mxu0 0.0
        %1049 = vmatpush.msra.mxu0 0.0
        %1050 = vmatpush.msra.mxu0 %v540
        %1051 = vmatpush.msra.mxu0 %v539
        %1052 = vmatpush.msra.mxu0 %v538
        %1053 = vmatpush.msra.mxu0 %v537
        %1054 = vmatmul.f32.gmra.mxu0 %v956
        %v1055 = vpop.f32.mrf.mxu0
        %v1056 = vadd.f32 %v943, %v1055
        %1057 = vdwg.mxu0
        %1058 = vmatpush.msra.mxu0 0.0
        %1059 = vmatpush.msra.mxu0 0.0
        %1060 = vmatpush.msra.mxu0 0.0
        %1061 = vmatpush.msra.mxu0 0.0
        %1062 = vmatpush.msra.mxu0 0.0
        %1063 = vmatpush.msra.mxu0 0.0
        %1064 = vmatpush.msra.mxu0 0.0
        %1065 = vmatpush.msra.mxu0 0.0
        %1066 = vmatpush.msra.mxu0 0.0
        %1067 = vmatpush.msra.mxu0 0.0
        %1068 = vmatpush.msra.mxu0 0.0
        %1069 = vmatpush.msra.mxu0 0.0
        %1070 = vmatpush.msra.mxu0 %v544
        %1071 = vmatpush.msra.mxu0 %v543
        %1072 = vmatpush.msra.mxu0 %v542
        %1073 = vmatpush.msra.mxu0 %v541
        %1074 = vmatmul.f32.gmra.mxu0 %v956
        %v1075 = vpop.f32.mrf.mxu0
        %v1076 = vadd.f32 %v944, %v1075
        %1077 = vdwg.mxu0
        %1078 = vmatpush.msra.mxu0 0.0
        %1079 = vmatpush.msra.mxu0 0.0
        %1080 = vmatpush.msra.mxu0 0.0
        %1081 = vmatpush.msra.mxu0 0.0
        %1082 = vmatpush.msra.mxu0 0.0
        %1083 = vmatpush.msra.mxu0 0.0
        %1084 = vmatpush.msra.mxu0 0.0
        %1085 = vmatpush.msra.mxu0 0.0
        %1086 = vmatpush.msra.mxu0 0.0
        %1087 = vmatpush.msra.mxu0 0.0
        %1088 = vmatpush.msra.mxu0 0.0
        %1089 = vmatpush.msra.mxu0 0.0
        %1090 = vmatpush.msra.mxu0 %v548
        %1091 = vmatpush.msra.mxu0 %v547
        %1092 = vmatpush.msra.mxu0 %v546
        %1093 = vmatpush.msra.mxu0 %v545
        %1094 = vmatmul.f32.gmra.mxu0 %v956
        %v1095 = vpop.f32.mrf.mxu0
        %v1096 = vadd.f32 %v945, %v1095
        %1097 = vdwg.mxu0
        %1098 = vmatpush.msra.mxu0 0.0
        %1099 = vmatpush.msra.mxu0 0.0
        %1100 = vmatpush.msra.mxu0 0.0
        %1101 = vmatpush.msra.mxu0 0.0
        %1102 = vmatpush.msra.mxu0 0.0
        %1103 = vmatpush.msra.mxu0 0.0
        %1104 = vmatpush.msra.mxu0 0.0
        %1105 = vmatpush.msra.mxu0 0.0
        %1106 = vmatpush.msra.mxu0 0.0
        %1107 = vmatpush.msra.mxu0 0.0
        %1108 = vmatpush.msra.mxu0 0.0
        %1109 = vmatpush.msra.mxu0 0.0
        %1110 = vmatpush.msra.mxu0 %v552
        %1111 = vmatpush.msra.mxu0 %v551
        %1112 = vmatpush.msra.mxu0 %v550
        %1113 = vmatpush.msra.mxu0 %v549
        %1114 = vmatmul.f32.gmra.mxu0 %v956
        %v1115 = vpop.f32.mrf.mxu0
        %v1116 = vadd.f32 %v946, %v1115
        %1117 = vdwg.mxu0
        %vm1118 = vcmask 31744
        %v1120 = vsel %vm1118, %v600, 0
        %v1123 = vsel %vm1118, %v788, 0
        %1125 = vmatpush.xpose.msra.mxu0 0.0
        %1126 = vmatpush.xpose.msra.mxu0 0.0
        %1127 = vmatpush.xpose.msra.mxu0 0.0
        %1128 = vmatpush.xpose.msra.mxu0 0.0
        %1129 = vmatpush.xpose.msra.mxu0 0.0
        %1130 = vmatpush.xpose.msra.mxu0 0.0
        %1131 = vmatpush.xpose.msra.mxu0 0.0
        %1132 = vmatpush.xpose.msra.mxu0 0.0
        %1133 = vmatpush.xpose.msra.mxu0 0.0
        %1134 = vmatpush.xpose.msra.mxu0 0.0
        %1135 = vmatpush.xpose.msra.mxu0 0.0
        %1136 = vmatpush.xpose.msra.mxu0 0.0
        %1137 = vmatpush.xpose.msra.mxu0 0.0
        %1138 = vmatpush.xpose.msra.mxu0 0.0
        %1139 = vmatpush.xpose.msra.mxu0 0.0
        %1140 = vmatpush.xpose.msra.mxu0 %v1123
        %1141 = vmatmul.f32.gmra.mxu0 %v1120
        %v1142 = vpop.f32.mrf.mxu0
        %v1143 = vadd.f32 0.0, %v1142
        %1144 = vdwg.mxu0
        %v1146 = vsel %vm1118, %v620, 0
        %v1149 = vsel %vm1118, %v808, 0
        %1151 = vmatpush.xpose.msra.mxu0 0.0
        %1152 = vmatpush.xpose.msra.mxu0 0.0
        %1153 = vmatpush.xpose.msra.mxu0 0.0
        %1154 = vmatpush.xpose.msra.mxu0 0.0
        %1155 = vmatpush.xpose.msra.mxu0 0.0
        %1156 = vmatpush.xpose.msra.mxu0 0.0
        %1157 = vmatpush.xpose.msra.mxu0 0.0
        %1158 = vmatpush.xpose.msra.mxu0 0.0
        %1159 = vmatpush.xpose.msra.mxu0 0.0
        %1160 = vmatpush.xpose.msra.mxu0 0.0
        %1161 = vmatpush.xpose.msra.mxu0 0.0
        %1162 = vmatpush.xpose.msra.mxu0 0.0
        %1163 = vmatpush.xpose.msra.mxu0 0.0
        %1164 = vmatpush.xpose.msra.mxu0 0.0
        %1165 = vmatpush.xpose.msra.mxu0 0.0
        %1166 = vmatpush.xpose.msra.mxu0 %v1149
        %1167 = vmatmul.f32.gmra.mxu0 %v1146
        %v1168 = vpop.f32.mrf.mxu0
        %v1169 = vadd.f32 0.0, %v1168
        %1170 = vdwg.mxu0
        %v1172 = vsel %vm1118, %v640, 0
        %v1175 = vsel %vm1118, %v828, 0
        %1177 = vmatpush.xpose.msra.mxu0 0.0
        %1178 = vmatpush.xpose.msra.mxu0 0.0
        %1179 = vmatpush.xpose.msra.mxu0 0.0
        %1180 = vmatpush.xpose.msra.mxu0 0.0
        %1181 = vmatpush.xpose.msra.mxu0 0.0
        %1182 = vmatpush.xpose.msra.mxu0 0.0
        %1183 = vmatpush.xpose.msra.mxu0 0.0
        %1184 = vmatpush.xpose.msra.mxu0 0.0
        %1185 = vmatpush.xpose.msra.mxu0 0.0
        %1186 = vmatpush.xpose.msra.mxu0 0.0
        %1187 = vmatpush.xpose.msra.mxu0 0.0
        %1188 = vmatpush.xpose.msra.mxu0 0.0
        %1189 = vmatpush.xpose.msra.mxu0 0.0
        %1190 = vmatpush.xpose.msra.mxu0 0.0
        %1191 = vmatpush.xpose.msra.mxu0 0.0
        %1192 = vmatpush.xpose.msra.mxu0 %v1175
        %1193 = vmatmul.f32.gmra.mxu0 %v1172
        %v1194 = vpop.f32.mrf.mxu0
        %v1195 = vadd.f32 0.0, %v1194
        %1196 = vdwg.mxu0
        %v1198 = vsel %vm1118, %v660, 0
        %v1201 = vsel %vm1118, %v848, 0
        %1203 = vmatpush.xpose.msra.mxu0 0.0
        %1204 = vmatpush.xpose.msra.mxu0 0.0
        %1205 = vmatpush.xpose.msra.mxu0 0.0
        %1206 = vmatpush.xpose.msra.mxu0 0.0
        %1207 = vmatpush.xpose.msra.mxu0 0.0
        %1208 = vmatpush.xpose.msra.mxu0 0.0
        %1209 = vmatpush.xpose.msra.mxu0 0.0
        %1210 = vmatpush.xpose.msra.mxu0 0.0
        %1211 = vmatpush.xpose.msra.mxu0 0.0
        %1212 = vmatpush.xpose.msra.mxu0 0.0
        %1213 = vmatpush.xpose.msra.mxu0 0.0
        %1214 = vmatpush.xpose.msra.mxu0 0.0
        %1215 = vmatpush.xpose.msra.mxu0 0.0
        %1216 = vmatpush.xpose.msra.mxu0 0.0
        %1217 = vmatpush.xpose.msra.mxu0 0.0
        %1218 = vmatpush.xpose.msra.mxu0 %v1201
        %1219 = vmatmul.f32.gmra.mxu0 %v1198
        %v1220 = vpop.f32.mrf.mxu0
        %v1221 = vadd.f32 0.0, %v1220
        %1222 = vdwg.mxu0
        %v1224 = vsel %vm1118, %v680, 0
        %v1227 = vsel %vm1118, %v868, 0
        %1229 = vmatpush.xpose.msra.mxu0 0.0
        %1230 = vmatpush.xpose.msra.mxu0 0.0
        %1231 = vmatpush.xpose.msra.mxu0 0.0
        %1232 = vmatpush.xpose.msra.mxu0 0.0
        %1233 = vmatpush.xpose.msra.mxu0 0.0
        %1234 = vmatpush.xpose.msra.mxu0 0.0
        %1235 = vmatpush.xpose.msra.mxu0 0.0
        %1236 = vmatpush.xpose.msra.mxu0 0.0
        %1237 = vmatpush.xpose.msra.mxu0 0.0
        %1238 = vmatpush.xpose.msra.mxu0 0.0
        %1239 = vmatpush.xpose.msra.mxu0 0.0
        %1240 = vmatpush.xpose.msra.mxu0 0.0
        %1241 = vmatpush.xpose.msra.mxu0 0.0
        %1242 = vmatpush.xpose.msra.mxu0 0.0
        %1243 = vmatpush.xpose.msra.mxu0 0.0
        %1244 = vmatpush.xpose.msra.mxu0 %v1227
        %1245 = vmatmul.f32.gmra.mxu0 %v1224
        %v1246 = vpop.f32.mrf.mxu0
        %v1247 = vadd.f32 0.0, %v1246
        %1248 = vdwg.mxu0
        %v1250 = vsel %vm1118, %v700, 0
        %v1253 = vsel %vm1118, %v888, 0
        %1255 = vmatpush.xpose.msra.mxu0 0.0
        %1256 = vmatpush.xpose.msra.mxu0 0.0
        %1257 = vmatpush.xpose.msra.mxu0 0.0
        %1258 = vmatpush.xpose.msra.mxu0 0.0
        %1259 = vmatpush.xpose.msra.mxu0 0.0
        %1260 = vmatpush.xpose.msra.mxu0 0.0
        %1261 = vmatpush.xpose.msra.mxu0 0.0
        %1262 = vmatpush.xpose.msra.mxu0 0.0
        %1263 = vmatpush.xpose.msra.mxu0 0.0
        %1264 = vmatpush.xpose.msra.mxu0 0.0
        %1265 = vmatpush.xpose.msra.mxu0 0.0
        %1266 = vmatpush.xpose.msra.mxu0 0.0
        %1267 = vmatpush.xpose.msra.mxu0 0.0
        %1268 = vmatpush.xpose.msra.mxu0 0.0
        %1269 = vmatpush.xpose.msra.mxu0 0.0
        %1270 = vmatpush.xpose.msra.mxu0 %v1253
        %1271 = vmatmul.f32.gmra.mxu0 %v1250
        %v1272 = vpop.f32.mrf.mxu0
        %v1273 = vadd.f32 0.0, %v1272
        %1274 = vdwg.mxu0
        %v1276 = vsel %vm1118, %v720, 0
        %v1279 = vsel %vm1118, %v908, 0
        %1281 = vmatpush.xpose.msra.mxu0 0.0
        %1282 = vmatpush.xpose.msra.mxu0 0.0
        %1283 = vmatpush.xpose.msra.mxu0 0.0
        %1284 = vmatpush.xpose.msra.mxu0 0.0
        %1285 = vmatpush.xpose.msra.mxu0 0.0
        %1286 = vmatpush.xpose.msra.mxu0 0.0
        %1287 = vmatpush.xpose.msra.mxu0 0.0
        %1288 = vmatpush.xpose.msra.mxu0 0.0
        %1289 = vmatpush.xpose.msra.mxu0 0.0
        %1290 = vmatpush.xpose.msra.mxu0 0.0
        %1291 = vmatpush.xpose.msra.mxu0 0.0
        %1292 = vmatpush.xpose.msra.mxu0 0.0
        %1293 = vmatpush.xpose.msra.mxu0 0.0
        %1294 = vmatpush.xpose.msra.mxu0 0.0
        %1295 = vmatpush.xpose.msra.mxu0 0.0
        %1296 = vmatpush.xpose.msra.mxu0 %v1279
        %1297 = vmatmul.f32.gmra.mxu0 %v1276
        %v1298 = vpop.f32.mrf.mxu0
        %v1299 = vadd.f32 0.0, %v1298
        %1300 = vdwg.mxu0
        %v1302 = vsel %vm1118, %v740, 0
        %v1305 = vsel %vm1118, %v928, 0
        %1307 = vmatpush.xpose.msra.mxu0 0.0
        %1308 = vmatpush.xpose.msra.mxu0 0.0
        %1309 = vmatpush.xpose.msra.mxu0 0.0
        %1310 = vmatpush.xpose.msra.mxu0 0.0
        %1311 = vmatpush.xpose.msra.mxu0 0.0
        %1312 = vmatpush.xpose.msra.mxu0 0.0
        %1313 = vmatpush.xpose.msra.mxu0 0.0
        %1314 = vmatpush.xpose.msra.mxu0 0.0
        %1315 = vmatpush.xpose.msra.mxu0 0.0
        %1316 = vmatpush.xpose.msra.mxu0 0.0
        %1317 = vmatpush.xpose.msra.mxu0 0.0
        %1318 = vmatpush.xpose.msra.mxu0 0.0
        %1319 = vmatpush.xpose.msra.mxu0 0.0
        %1320 = vmatpush.xpose.msra.mxu0 0.0
        %1321 = vmatpush.xpose.msra.mxu0 0.0
        %1322 = vmatpush.xpose.msra.mxu0 %v1305
        %1323 = vmatmul.f32.gmra.mxu0 %v1302
        %v1324 = vpop.f32.mrf.mxu0
        %v1325 = vadd.f32 0.0, %v1324
        %1326 = vdwg.mxu0
        %v1327 = vmul.f32 %v1143, 0.5
        %v1328 = vmul.f32 %v1169, 0.5
        %v1329 = vmul.f32 %v1195, 0.5
        %v1330 = vmul.f32 %v1221, 0.5
        %v1331 = vmul.f32 %v1247, 0.5
        %v1332 = vmul.f32 %v1273, 0.5
        %v1333 = vmul.f32 %v1299, 0.5
        %v1334 = vmul.f32 %v1325, 0.5
        %vm1335 = vcmask 64512
        %v1336 = vsel %vm1335, %v1327, -inf
        %1337 = vmax.xlane.f32.xlu0 %v1336
        %v1338 = vpop.xlane.xlu0 %1337
        %v1339 = vsel %vm1335, %v1328, -inf
        %1340 = vmax.xlane.f32.xlu0 %v1339
        %v1341 = vpop.xlane.xlu0 %1340
        %v1342 = vsel %vm1335, %v1329, -inf
        %1343 = vmax.xlane.f32.xlu0 %v1342
        %v1344 = vpop.xlane.xlu0 %1343
        %v1345 = vsel %vm1335, %v1330, -inf
        %1346 = vmax.xlane.f32.xlu0 %v1345
        %v1347 = vpop.xlane.xlu0 %1346
        %v1348 = vsel %vm1335, %v1331, -inf
        %1349 = vmax.xlane.f32.xlu0 %v1348
        %v1350 = vpop.xlane.xlu0 %1349
        %v1351 = vsel %vm1335, %v1332, -inf
        %1352 = vmax.xlane.f32.xlu0 %v1351
        %v1353 = vpop.xlane.xlu0 %1352
        %v1354 = vsel %vm1335, %v1333, -inf
        %1355 = vmax.xlane.f32.xlu0 %v1354
        %v1356 = vpop.xlane.xlu0 %1355
        %v1357 = vsel %vm1335, %v1334, -inf
        %1358 = vmax.xlane.f32.xlu0 %v1357
        %v1359 = vpop.xlane.xlu0 %1358
        %v1360 = vsub.f32 %v1327, %v1338
        %v1361 = vsub.f32 %v1328, %v1341
        %v1362 = vsub.f32 %v1329, %v1344
        %v1363 = vsub.f32 %v1330, %v1347
        %v1364 = vsub.f32 %v1331, %v1350
        %v1365 = vsub.f32 %v1332, %v1353
        %v1366 = vsub.f32 %v1333, %v1356
        %v1367 = vsub.f32 %v1334, %v1359
        %v1368 = vmul.f32 %v1360, 1.442695
        %v1369 = vpow.pop %v1368
        %v1370 = vmul.f32 %v1361, 1.442695
        %v1371 = vpow.pop %v1370
        %v1372 = vmul.f32 %v1362, 1.442695
        %v1373 = vpow.pop %v1372
        %v1374 = vmul.f32 %v1363, 1.442695
        %v1375 = vpow.pop %v1374
        %v1376 = vmul.f32 %v1364, 1.442695
        %v1377 = vpow.pop %v1376
        %v1378 = vmul.f32 %v1365, 1.442695
        %v1379 = vpow.pop %v1378
        %v1380 = vmul.f32 %v1366, 1.442695
        %v1381 = vpow.pop %v1380
        %v1382 = vmul.f32 %v1367, 1.442695
        %v1383 = vpow.pop %v1382
        %v1384 = vsel %vm1335, %v1369, 0.0
        %1385 = vadd.xlane.f32.xlu0 %v1384
        %v1386 = vpop.xlane.xlu0 %1385
        %v1387 = vsel %vm1335, %v1371, 0.0
        %1388 = vadd.xlane.f32.xlu0 %v1387
        %v1389 = vpop.xlane.xlu0 %1388
        %v1390 = vsel %vm1335, %v1373, 0.0
        %1391 = vadd.xlane.f32.xlu0 %v1390
        %v1392 = vpop.xlane.xlu0 %1391
        %v1393 = vsel %vm1335, %v1375, 0.0
        %1394 = vadd.xlane.f32.xlu0 %v1393
        %v1395 = vpop.xlane.xlu0 %1394
        %v1396 = vsel %vm1335, %v1377, 0.0
        %1397 = vadd.xlane.f32.xlu0 %v1396
        %v1398 = vpop.xlane.xlu0 %1397
        %v1399 = vsel %vm1335, %v1379, 0.0
        %1400 = vadd.xlane.f32.xlu0 %v1399
        %v1401 = vpop.xlane.xlu0 %1400
        %v1402 = vsel %vm1335, %v1381, 0.0
        %1403 = vadd.xlane.f32.xlu0 %v1402
        %v1404 = vpop.xlane.xlu0 %1403
        %v1405 = vsel %vm1335, %v1383, 0.0
        %1406 = vadd.xlane.f32.xlu0 %v1405
        %v1407 = vpop.xlane.xlu0 %1406
        %v1408 = vrcp.pop %v1386
        %v1409 = vmul.f32 %v1386, %v1408
        %v1410 = vsub.f32 1.0, %v1409
        %v1411 = vmul.f32 %v1408, %v1410
        %v1412 = vadd.f32 %v1408, %v1411
        %vm1413 = vweird.f32 %v1386
        %vm1414 = vweird.f32 %v1408
        %vm1415 = vmor %vm1413, %vm1414
        %v1416 = vsel %vm1415, %v1408, %v1412
        %v1417 = vand.u32 2147483647, %v1386
        %vm1418 = vcmp.eq.f32.partialorder %v1417, 8.507059e+37
        %v1419 = vand.u32 %v1386, 2147483648
        %v1420 = vor.u32 1.1754944e-38, %v1419
        %v1421 = vsel %vm1418, %v1420, %v1416
        %v1422 = vmul.f32 %v1369, %v1421
        %v1423 = vrcp.pop %v1389
        %v1424 = vmul.f32 %v1389, %v1423
        %v1425 = vsub.f32 1.0, %v1424
        %v1426 = vmul.f32 %v1423, %v1425
        %v1427 = vadd.f32 %v1423, %v1426
        %vm1428 = vweird.f32 %v1389
        %vm1429 = vweird.f32 %v1423
        %vm1430 = vmor %vm1428, %vm1429
        %v1431 = vsel %vm1430, %v1423, %v1427
        %v1432 = vand.u32 2147483647, %v1389
        %vm1433 = vcmp.eq.f32.partialorder %v1432, 8.507059e+37
        %v1434 = vand.u32 %v1389, 2147483648
        %v1435 = vor.u32 1.1754944e-38, %v1434
        %v1436 = vsel %vm1433, %v1435, %v1431
        %v1437 = vmul.f32 %v1371, %v1436
        %v1438 = vrcp.pop %v1392
        %v1439 = vmul.f32 %v1392, %v1438
        %v1440 = vsub.f32 1.0, %v1439
        %v1441 = vmul.f32 %v1438, %v1440
        %v1442 = vadd.f32 %v1438, %v1441
        %vm1443 = vweird.f32 %v1392
        %vm1444 = vweird.f32 %v1438
        %vm1445 = vmor %vm1443, %vm1444
        %v1446 = vsel %vm1445, %v1438, %v1442
        %v1447 = vand.u32 2147483647, %v1392
        %vm1448 = vcmp.eq.f32.partialorder %v1447, 8.507059e+37
        %v1449 = vand.u32 %v1392, 2147483648
        %v1450 = vor.u32 1.1754944e-38, %v1449
        %v1451 = vsel %vm1448, %v1450, %v1446
        %v1452 = vmul.f32 %v1373, %v1451
        %v1453 = vrcp.pop %v1395
        %v1454 = vmul.f32 %v1395, %v1453
        %v1455 = vsub.f32 1.0, %v1454
        %v1456 = vmul.f32 %v1453, %v1455
        %v1457 = vadd.f32 %v1453, %v1456
        %vm1458 = vweird.f32 %v1395
        %vm1459 = vweird.f32 %v1453
        %vm1460 = vmor %vm1458, %vm1459
        %v1461 = vsel %vm1460, %v1453, %v1457
        %v1462 = vand.u32 2147483647, %v1395
        %vm1463 = vcmp.eq.f32.partialorder %v1462, 8.507059e+37
        %v1464 = vand.u32 %v1395, 2147483648
        %v1465 = vor.u32 1.1754944e-38, %v1464
        %v1466 = vsel %vm1463, %v1465, %v1461
        %v1467 = vmul.f32 %v1375, %v1466
        %v1468 = vrcp.pop %v1398
        %v1469 = vmul.f32 %v1398, %v1468
        %v1470 = vsub.f32 1.0, %v1469
        %v1471 = vmul.f32 %v1468, %v1470
        %v1472 = vadd.f32 %v1468, %v1471
        %vm1473 = vweird.f32 %v1398
        %vm1474 = vweird.f32 %v1468
        %vm1475 = vmor %vm1473, %vm1474
        %v1476 = vsel %vm1475, %v1468, %v1472
        %v1477 = vand.u32 2147483647, %v1398
        %vm1478 = vcmp.eq.f32.partialorder %v1477, 8.507059e+37
        %v1479 = vand.u32 %v1398, 2147483648
        %v1480 = vor.u32 1.1754944e-38, %v1479
        %v1481 = vsel %vm1478, %v1480, %v1476
        %v1482 = vmul.f32 %v1377, %v1481
        %v1483 = vrcp.pop %v1401
        %v1484 = vmul.f32 %v1401, %v1483
        %v1485 = vsub.f32 1.0, %v1484
        %v1486 = vmul.f32 %v1483, %v1485
        %v1487 = vadd.f32 %v1483, %v1486
        %vm1488 = vweird.f32 %v1401
        %vm1489 = vweird.f32 %v1483
        %vm1490 = vmor %vm1488, %vm1489
        %v1491 = vsel %vm1490, %v1483, %v1487
        %v1492 = vand.u32 2147483647, %v1401
        %vm1493 = vcmp.eq.f32.partialorder %v1492, 8.507059e+37
        %v1494 = vand.u32 %v1401, 2147483648
        %v1495 = vor.u32 1.1754944e-38, %v1494
        %v1496 = vsel %vm1493, %v1495, %v1491
        %v1497 = vmul.f32 %v1379, %v1496
        %v1498 = vrcp.pop %v1404
        %v1499 = vmul.f32 %v1404, %v1498
        %v1500 = vsub.f32 1.0, %v1499
        %v1501 = vmul.f32 %v1498, %v1500
        %v1502 = vadd.f32 %v1498, %v1501
        %vm1503 = vweird.f32 %v1404
        %vm1504 = vweird.f32 %v1498
        %vm1505 = vmor %vm1503, %vm1504
        %v1506 = vsel %vm1505, %v1498, %v1502
        %v1507 = vand.u32 2147483647, %v1404
        %vm1508 = vcmp.eq.f32.partialorder %v1507, 8.507059e+37
        %v1509 = vand.u32 %v1404, 2147483648
        %v1510 = vor.u32 1.1754944e-38, %v1509
        %v1511 = vsel %vm1508, %v1510, %v1506
        %v1512 = vmul.f32 %v1381, %v1511
        %v1513 = vrcp.pop %v1407
        %v1514 = vmul.f32 %v1407, %v1513
        %v1515 = vsub.f32 1.0, %v1514
        %v1516 = vmul.f32 %v1513, %v1515
        %v1517 = vadd.f32 %v1513, %v1516
        %vm1518 = vweird.f32 %v1407
        %vm1519 = vweird.f32 %v1513
        %vm1520 = vmor %vm1518, %vm1519
        %v1521 = vsel %vm1520, %v1513, %v1517
        %v1522 = vand.u32 2147483647, %v1407
        %vm1523 = vcmp.eq.f32.partialorder %v1522, 8.507059e+37
        %v1524 = vand.u32 %v1407, 2147483648
        %v1525 = vor.u32 1.1754944e-38, %v1524
        %v1526 = vsel %vm1523, %v1525, %v1521
        %v1527 = vmul.f32 %v1383, %v1526
        %v1529 = vsel %vm1335, %v1422, 0
        %1531 = vmatpush.msra.mxu0 0.0
        %1532 = vmatpush.msra.mxu0 0.0
        %1533 = vmatpush.msra.mxu0 0.0
        %1534 = vmatpush.msra.mxu0 0.0
        %1535 = vmatpush.msra.mxu0 0.0
        %1536 = vmatpush.msra.mxu0 0.0
        %1537 = vmatpush.msra.mxu0 0.0
        %1538 = vmatpush.msra.mxu0 0.0
        %1539 = vmatpush.msra.mxu0 0.0
        %1540 = vmatpush.msra.mxu0 0.0
        %1541 = vmatpush.msra.mxu0 0.0
        %1542 = vmatpush.msra.mxu0 0.0
        %1543 = vmatpush.msra.mxu0 0.0
        %1544 = vmatpush.msra.mxu0 0.0
        %1545 = vmatpush.msra.mxu0 0.0
        %1546 = vmatpush.msra.mxu0 %v976
        %1547 = vmatmul.f32.gmra.mxu0 %v1529
        %v1548 = vpop.f32.mrf.mxu0
        %v1549 = vadd.f32 0.0, %v1548
        %1550 = vdwg.mxu0
        %v1552 = vsel %vm1335, %v1437, 0
        %1554 = vmatpush.msra.mxu0 0.0
        %1555 = vmatpush.msra.mxu0 0.0
        %1556 = vmatpush.msra.mxu0 0.0
        %1557 = vmatpush.msra.mxu0 0.0
        %1558 = vmatpush.msra.mxu0 0.0
        %1559 = vmatpush.msra.mxu0 0.0
        %1560 = vmatpush.msra.mxu0 0.0
        %1561 = vmatpush.msra.mxu0 0.0
        %1562 = vmatpush.msra.mxu0 0.0
        %1563 = vmatpush.msra.mxu0 0.0
        %1564 = vmatpush.msra.mxu0 0.0
        %1565 = vmatpush.msra.mxu0 0.0
        %1566 = vmatpush.msra.mxu0 0.0
        %1567 = vmatpush.msra.mxu0 0.0
        %1568 = vmatpush.msra.mxu0 0.0
        %1569 = vmatpush.msra.mxu0 %v996
        %1570 = vmatmul.f32.gmra.mxu0 %v1552
        %v1571 = vpop.f32.mrf.mxu0
        %v1572 = vadd.f32 0.0, %v1571
        %1573 = vdwg.mxu0
        %v1575 = vsel %vm1335, %v1452, 0
        %1577 = vmatpush.msra.mxu0 0.0
        %1578 = vmatpush.msra.mxu0 0.0
        %1579 = vmatpush.msra.mxu0 0.0
        %1580 = vmatpush.msra.mxu0 0.0
        %1581 = vmatpush.msra.mxu0 0.0
        %1582 = vmatpush.msra.mxu0 0.0
        %1583 = vmatpush.msra.mxu0 0.0
        %1584 = vmatpush.msra.mxu0 0.0
        %1585 = vmatpush.msra.mxu0 0.0
        %1586 = vmatpush.msra.mxu0 0.0
        %1587 = vmatpush.msra.mxu0 0.0
        %1588 = vmatpush.msra.mxu0 0.0
        %1589 = vmatpush.msra.mxu0 0.0
        %1590 = vmatpush.msra.mxu0 0.0
        %1591 = vmatpush.msra.mxu0 0.0
        %1592 = vmatpush.msra.mxu0 %v1016
        %1593 = vmatmul.f32.gmra.mxu0 %v1575
        %v1594 = vpop.f32.mrf.mxu0
        %v1595 = vadd.f32 0.0, %v1594
        %1596 = vdwg.mxu0
        %v1598 = vsel %vm1335, %v1467, 0
        %1600 = vmatpush.msra.mxu0 0.0
        %1601 = vmatpush.msra.mxu0 0.0
        %1602 = vmatpush.msra.mxu0 0.0
        %1603 = vmatpush.msra.mxu0 0.0
        %1604 = vmatpush.msra.mxu0 0.0
        %1605 = vmatpush.msra.mxu0 0.0
        %1606 = vmatpush.msra.mxu0 0.0
        %1607 = vmatpush.msra.mxu0 0.0
        %1608 = vmatpush.msra.mxu0 0.0
        %1609 = vmatpush.msra.mxu0 0.0
        %1610 = vmatpush.msra.mxu0 0.0
        %1611 = vmatpush.msra.mxu0 0.0
        %1612 = vmatpush.msra.mxu0 0.0
        %1613 = vmatpush.msra.mxu0 0.0
        %1614 = vmatpush.msra.mxu0 0.0
        %1615 = vmatpush.msra.mxu0 %v1036
        %1616 = vmatmul.f32.gmra.mxu0 %v1598
        %v1617 = vpop.f32.mrf.mxu0
        %v1618 = vadd.f32 0.0, %v1617
        %1619 = vdwg.mxu0
        %v1621 = vsel %vm1335, %v1482, 0
        %1623 = vmatpush.msra.mxu0 0.0
        %1624 = vmatpush.msra.mxu0 0.0
        %1625 = vmatpush.msra.mxu0 0.0
        %1626 = vmatpush.msra.mxu0 0.0
        %1627 = vmatpush.msra.mxu0 0.0
        %1628 = vmatpush.msra.mxu0 0.0
        %1629 = vmatpush.msra.mxu0 0.0
        %1630 = vmatpush.msra.mxu0 0.0
        %1631 = vmatpush.msra.mxu0 0.0
        %1632 = vmatpush.msra.mxu0 0.0
        %1633 = vmatpush.msra.mxu0 0.0
        %1634 = vmatpush.msra.mxu0 0.0
        %1635 = vmatpush.msra.mxu0 0.0
        %1636 = vmatpush.msra.mxu0 0.0
        %1637 = vmatpush.msra.mxu0 0.0
        %1638 = vmatpush.msra.mxu0 %v1056
        %1639 = vmatmul.f32.gmra.mxu0 %v1621
        %v1640 = vpop.f32.mrf.mxu0
        %v1641 = vadd.f32 0.0, %v1640
        %1642 = vdwg.mxu0
        %v1644 = vsel %vm1335, %v1497, 0
        %1646 = vmatpush.msra.mxu0 0.0
        %1647 = vmatpush.msra.mxu0 0.0
        %1648 = vmatpush.msra.mxu0 0.0
        %1649 = vmatpush.msra.mxu0 0.0
        %1650 = vmatpush.msra.mxu0 0.0
        %1651 = vmatpush.msra.mxu0 0.0
        %1652 = vmatpush.msra.mxu0 0.0
        %1653 = vmatpush.msra.mxu0 0.0
        %1654 = vmatpush.msra.mxu0 0.0
        %1655 = vmatpush.msra.mxu0 0.0
        %1656 = vmatpush.msra.mxu0 0.0
        %1657 = vmatpush.msra.mxu0 0.0
        %1658 = vmatpush.msra.mxu0 0.0
        %1659 = vmatpush.msra.mxu0 0.0
        %1660 = vmatpush.msra.mxu0 0.0
        %1661 = vmatpush.msra.mxu0 %v1076
        %1662 = vmatmul.f32.gmra.mxu0 %v1644
        %v1663 = vpop.f32.mrf.mxu0
        %v1664 = vadd.f32 0.0, %v1663
        %1665 = vdwg.mxu0
        %v1667 = vsel %vm1335, %v1512, 0
        %1669 = vmatpush.msra.mxu0 0.0
        %1670 = vmatpush.msra.mxu0 0.0
        %1671 = vmatpush.msra.mxu0 0.0
        %1672 = vmatpush.msra.mxu0 0.0
        %1673 = vmatpush.msra.mxu0 0.0
        %1674 = vmatpush.msra.mxu0 0.0
        %1675 = vmatpush.msra.mxu0 0.0
        %1676 = vmatpush.msra.mxu0 0.0
        %1677 = vmatpush.msra.mxu0 0.0
        %1678 = vmatpush.msra.mxu0 0.0
        %1679 = vmatpush.msra.mxu0 0.0
        %1680 = vmatpush.msra.mxu0 0.0
        %1681 = vmatpush.msra.mxu0 0.0
        %1682 = vmatpush.msra.mxu0 0.0
        %1683 = vmatpush.msra.mxu0 0.0
        %1684 = vmatpush.msra.mxu0 %v1096
        %1685 = vmatmul.f32.gmra.mxu0 %v1667
        %v1686 = vpop.f32.mrf.mxu0
        %v1687 = vadd.f32 0.0, %v1686
        %1688 = vdwg.mxu0
        %v1690 = vsel %vm1335, %v1527, 0
        %1692 = vmatpush.msra.mxu0 0.0
        %1693 = vmatpush.msra.mxu0 0.0
        %1694 = vmatpush.msra.mxu0 0.0
        %1695 = vmatpush.msra.mxu0 0.0
        %1696 = vmatpush.msra.mxu0 0.0
        %1697 = vmatpush.msra.mxu0 0.0
        %1698 = vmatpush.msra.mxu0 0.0
        %1699 = vmatpush.msra.mxu0 0.0
        %1700 = vmatpush.msra.mxu0 0.0
        %1701 = vmatpush.msra.mxu0 0.0
        %1702 = vmatpush.msra.mxu0 0.0
        %1703 = vmatpush.msra.mxu0 0.0
        %1704 = vmatpush.msra.mxu0 0.0
        %1705 = vmatpush.msra.mxu0 0.0
        %1706 = vmatpush.msra.mxu0 0.0
        %1707 = vmatpush.msra.mxu0 %v1116
        %1708 = vmatmul.f32.gmra.mxu0 %v1690
        %v1709 = vpop.f32.mrf.mxu0
        %v1710 = vadd.f32 0.0, %v1709
        %1711 = vdwg.mxu0
        %v1712 = vld [vmem:[%s9] sm:$0xf]
        %v1713 = vld [vmem:[%s9 + $0x4] sm:$0xf]
        %v1714 = vld [vmem:[%s9 + $0x8] sm:$0xf]
        %v1715 = vld [vmem:[%s9 + $0xc] sm:$0xf]
        %v1716 = vld [vmem:[%s9 + $0x10] sm:$0xf]
        %v1717 = vld [vmem:[%s9 + $0x14] sm:$0xf]
        %v1718 = vld [vmem:[%s9 + $0x18] sm:$0xf]
        %v1719 = vld [vmem:[%s9 + $0x1c] sm:$0xf]
        %v1721 = vsel %vm1118, %v1549, 0
        %vm1723 = vcmask 1043456
        %v1725 = vsel %vm1723, %v1712, 0
        %1727 = vmatpush.msra.mxu0 0.0
        %1728 = vmatpush.msra.mxu0 0.0
        %1729 = vmatpush.msra.mxu0 0.0
        %1730 = vmatpush.msra.mxu0 0.0
        %1731 = vmatpush.msra.mxu0 0.0
        %1732 = vmatpush.msra.mxu0 0.0
        %1733 = vmatpush.msra.mxu0 0.0
        %1734 = vmatpush.msra.mxu0 0.0
        %1735 = vmatpush.msra.mxu0 0.0
        %1736 = vmatpush.msra.mxu0 0.0
        %1737 = vmatpush.msra.mxu0 0.0
        %1738 = vmatpush.msra.mxu0 0.0
        %1739 = vmatpush.msra.mxu0 0.0
        %1740 = vmatpush.msra.mxu0 0.0
        %1741 = vmatpush.msra.mxu0 0.0
        %1742 = vmatpush.msra.mxu0 %v1725
        %1743 = vmatmul.f32.gmra.mxu0 %v1721
        %v1744 = vpop.f32.mrf.mxu0
        %v1745 = vadd.f32 0.0, %v1744
        %1746 = vdwg.mxu0
        %v1748 = vsel %vm1118, %v1572, 0
        %v1751 = vsel %vm1723, %v1713, 0
        %1753 = vmatpush.msra.mxu0 0.0
        %1754 = vmatpush.msra.mxu0 0.0
        %1755 = vmatpush.msra.mxu0 0.0
        %1756 = vmatpush.msra.mxu0 0.0
        %1757 = vmatpush.msra.mxu0 0.0
        %1758 = vmatpush.msra.mxu0 0.0
        %1759 = vmatpush.msra.mxu0 0.0
        %1760 = vmatpush.msra.mxu0 0.0
        %1761 = vmatpush.msra.mxu0 0.0
        %1762 = vmatpush.msra.mxu0 0.0
        %1763 = vmatpush.msra.mxu0 0.0
        %1764 = vmatpush.msra.mxu0 0.0
        %1765 = vmatpush.msra.mxu0 0.0
        %1766 = vmatpush.msra.mxu0 0.0
        %1767 = vmatpush.msra.mxu0 0.0
        %1768 = vmatpush.msra.mxu0 %v1751
        %1769 = vmatmul.f32.gmra.mxu0 %v1748
        %v1770 = vpop.f32.mrf.mxu0
        %v1771 = vadd.f32 0.0, %v1770
        %1772 = vdwg.mxu0
        %v1774 = vsel %vm1118, %v1595, 0
        %v1777 = vsel %vm1723, %v1714, 0
        %1779 = vmatpush.msra.mxu0 0.0
        %1780 = vmatpush.msra.mxu0 0.0
        %1781 = vmatpush.msra.mxu0 0.0
        %1782 = vmatpush.msra.mxu0 0.0
        %1783 = vmatpush.msra.mxu0 0.0
        %1784 = vmatpush.msra.mxu0 0.0
        %1785 = vmatpush.msra.mxu0 0.0
        %1786 = vmatpush.msra.mxu0 0.0
        %1787 = vmatpush.msra.mxu0 0.0
        %1788 = vmatpush.msra.mxu0 0.0
        %1789 = vmatpush.msra.mxu0 0.0
        %1790 = vmatpush.msra.mxu0 0.0
        %1791 = vmatpush.msra.mxu0 0.0
        %1792 = vmatpush.msra.mxu0 0.0
        %1793 = vmatpush.msra.mxu0 0.0
        %1794 = vmatpush.msra.mxu0 %v1777
        %1795 = vmatmul.f32.gmra.mxu0 %v1774
        %v1796 = vpop.f32.mrf.mxu0
        %v1797 = vadd.f32 0.0, %v1796
        %1798 = vdwg.mxu0
        %v1800 = vsel %vm1118, %v1618, 0
        %v1803 = vsel %vm1723, %v1715, 0
        %1805 = vmatpush.msra.mxu0 0.0
        %1806 = vmatpush.msra.mxu0 0.0
        %1807 = vmatpush.msra.mxu0 0.0
        %1808 = vmatpush.msra.mxu0 0.0
        %1809 = vmatpush.msra.mxu0 0.0
        %1810 = vmatpush.msra.mxu0 0.0
        %1811 = vmatpush.msra.mxu0 0.0
        %1812 = vmatpush.msra.mxu0 0.0
        %1813 = vmatpush.msra.mxu0 0.0
        %1814 = vmatpush.msra.mxu0 0.0
        %1815 = vmatpush.msra.mxu0 0.0
        %1816 = vmatpush.msra.mxu0 0.0
        %1817 = vmatpush.msra.mxu0 0.0
        %1818 = vmatpush.msra.mxu0 0.0
        %1819 = vmatpush.msra.mxu0 0.0
        %1820 = vmatpush.msra.mxu0 %v1803
        %1821 = vmatmul.f32.gmra.mxu0 %v1800
        %v1822 = vpop.f32.mrf.mxu0
        %v1823 = vadd.f32 0.0, %v1822
        %1824 = vdwg.mxu0
        %v1826 = vsel %vm1118, %v1641, 0
        %v1829 = vsel %vm1723, %v1716, 0
        %1831 = vmatpush.msra.mxu0 0.0
        %1832 = vmatpush.msra.mxu0 0.0
        %1833 = vmatpush.msra.mxu0 0.0
        %1834 = vmatpush.msra.mxu0 0.0
        %1835 = vmatpush.msra.mxu0 0.0
        %1836 = vmatpush.msra.mxu0 0.0
        %1837 = vmatpush.msra.mxu0 0.0
        %1838 = vmatpush.msra.mxu0 0.0
        %1839 = vmatpush.msra.mxu0 0.0
        %1840 = vmatpush.msra.mxu0 0.0
        %1841 = vmatpush.msra.mxu0 0.0
        %1842 = vmatpush.msra.mxu0 0.0
        %1843 = vmatpush.msra.mxu0 0.0
        %1844 = vmatpush.msra.mxu0 0.0
        %1845 = vmatpush.msra.mxu0 0.0
        %1846 = vmatpush.msra.mxu0 %v1829
        %1847 = vmatmul.f32.gmra.mxu0 %v1826
        %v1848 = vpop.f32.mrf.mxu0
        %v1849 = vadd.f32 0.0, %v1848
        %1850 = vdwg.mxu0
        %v1852 = vsel %vm1118, %v1664, 0
        %v1855 = vsel %vm1723, %v1717, 0
        %1857 = vmatpush.msra.mxu0 0.0
        %1858 = vmatpush.msra.mxu0 0.0
        %1859 = vmatpush.msra.mxu0 0.0
        %1860 = vmatpush.msra.mxu0 0.0
        %1861 = vmatpush.msra.mxu0 0.0
        %1862 = vmatpush.msra.mxu0 0.0
        %1863 = vmatpush.msra.mxu0 0.0
        %1864 = vmatpush.msra.mxu0 0.0
        %1865 = vmatpush.msra.mxu0 0.0
        %1866 = vmatpush.msra.mxu0 0.0
        %1867 = vmatpush.msra.mxu0 0.0
        %1868 = vmatpush.msra.mxu0 0.0
        %1869 = vmatpush.msra.mxu0 0.0
        %1870 = vmatpush.msra.mxu0 0.0
        %1871 = vmatpush.msra.mxu0 0.0
        %1872 = vmatpush.msra.mxu0 %v1855
        %1873 = vmatmul.f32.gmra.mxu0 %v1852
        %v1874 = vpop.f32.mrf.mxu0
        %v1875 = vadd.f32 0.0, %v1874
        %1876 = vdwg.mxu0
        %v1878 = vsel %vm1118, %v1687, 0
        %v1881 = vsel %vm1723, %v1718, 0
        %1883 = vmatpush.msra.mxu0 0.0
        %1884 = vmatpush.msra.mxu0 0.0
        %1885 = vmatpush.msra.mxu0 0.0
        %1886 = vmatpush.msra.mxu0 0.0
        %1887 = vmatpush.msra.mxu0 0.0
        %1888 = vmatpush.msra.mxu0 0.0
        %1889 = vmatpush.msra.mxu0 0.0
        %1890 = vmatpush.msra.mxu0 0.0
        %1891 = vmatpush.msra.mxu0 0.0
        %1892 = vmatpush.msra.mxu0 0.0
        %1893 = vmatpush.msra.mxu0 0.0
        %1894 = vmatpush.msra.mxu0 0.0
        %1895 = vmatpush.msra.mxu0 0.0
        %1896 = vmatpush.msra.mxu0 0.0
        %1897 = vmatpush.msra.mxu0 0.0
        %1898 = vmatpush.msra.mxu0 %v1881
        %1899 = vmatmul.f32.gmra.mxu0 %v1878
        %v1900 = vpop.f32.mrf.mxu0
        %v1901 = vadd.f32 0.0, %v1900
        %1902 = vdwg.mxu0
        %v1904 = vsel %vm1118, %v1710, 0
        %v1907 = vsel %vm1723, %v1719, 0
        %1909 = vmatpush.msra.mxu0 0.0
        %1910 = vmatpush.msra.mxu0 0.0
        %1911 = vmatpush.msra.mxu0 0.0
        %1912 = vmatpush.msra.mxu0 0.0
        %1913 = vmatpush.msra.mxu0 0.0
        %1914 = vmatpush.msra.mxu0 0.0
        %1915 = vmatpush.msra.mxu0 0.0
        %1916 = vmatpush.msra.mxu0 0.0
        %1917 = vmatpush.msra.mxu0 0.0
        %1918 = vmatpush.msra.mxu0 0.0
        %1919 = vmatpush.msra.mxu0 0.0
        %1920 = vmatpush.msra.mxu0 0.0
        %1921 = vmatpush.msra.mxu0 0.0
        %1922 = vmatpush.msra.mxu0 0.0
        %1923 = vmatpush.msra.mxu0 0.0
        %1924 = vmatpush.msra.mxu0 %v1907
        %1925 = vmatmul.f32.gmra.mxu0 %v1904
        %v1926 = vpop.f32.mrf.mxu0
        %v1927 = vadd.f32 0.0, %v1926
        %1928 = vdwg.mxu0
        %v1929 = vsel %vm578, %v1745, 0.0
        %v1930 = vsel %vm578, %v1771, 0.0
        %v1931 = vadd.f32 %v1929, %v1930
        %v1932 = vsel %vm578, %v1797, 0.0
        %v1933 = vadd.f32 %v1931, %v1932
        %v1934 = vsel %vm578, %v1823, 0.0
        %v1935 = vadd.f32 %v1933, %v1934
        %v1936 = vsel %vm578, %v1849, 0.0
        %v1937 = vadd.f32 %v1935, %v1936
        %v1938 = vsel %vm578, %v1875, 0.0
        %v1939 = vadd.f32 %v1937, %v1938
        %v1940 = vsel %vm578, %v1901, 0.0
        %v1941 = vadd.f32 %v1939, %v1940
        %v1942 = vsel %vm578, %v1927, 0.0
        %v1943 = vadd.f32 %v1941, %v1942
        %v1944 = vld [vmem:[%s10] sm:$0x1]
        %v1946 = vperm.slane %v1944, 0
        %v1948 = vadd.f32 %v1943, %v1946
        %1949 = vst.msk [vmem:[%s434] sm:$0xff] %vm578, %v1948
        %1950 = vst.msk [vmem:[%s441] sm:$0xff] %vm1335, %v1422
        %1951 = vst.msk [vmem:[%s441 + $0x8] sm:$0xff] %vm1335, %v1437
        %1952 = vst.msk [vmem:[%s441 + $0x10] sm:$0xff] %vm1335, %v1452
        %1953 = vst.msk [vmem:[%s441 + $0x18] sm:$0xff] %vm1335, %v1467
        %1954 = vst.msk [vmem:[%s441 + $0x20] sm:$0xff] %vm1335, %v1482
        %1955 = vst.msk [vmem:[%s441 + $0x28] sm:$0xff] %vm1335, %v1497
        %1956 = vst.msk [vmem:[%s441 + $0x30] sm:$0xff] %vm1335, %v1512
        %1957 = vst.msk [vmem:[%s441 + $0x38] sm:$0xff] %vm1335, %v1527
        %s1958 = sand.u32 %s284, 1
        %s1959 = scalar_lea.sflag [#allocation3], %s1958
        %s1960 = sand.u32 %s284, 1
        %s1961 = smul.addr %s1960, 8
        %s1962 = scalar_lea.vmem [#allocation2], %s1961
        %s1963 = sand.u32 %s310, 1
        %s1964 = scalar_lea.sflag [#allocation5], %s1963
        %s1965 = sand.u32 %s310, 1
        %s1966 = smul.addr %s1965, 64
        %s1967 = scalar_lea.vmem [#allocation4], %s1966
        // Predicated region
        $region65: #{tpu_custom_call.1} parent=63 // pred_check
          %p1968 = pneg %p294
        $region66: #{tpu_custom_call.1} parent=63 // pred_check_branch
          %1970 = sbr.rel (%p1968) target = $region68
        $region67: #{tpu_custom_call.1} parent=63 // pred_region
          %1972 = vsyncadd %s1959, 0
          %s1973 = smul.addr %s30, 8
          %s1974 = scalar_lea.hbm %s11, %s1973
          %s1976 = sshll.u32 %s1962, 4
          %s1977 = int_to_ptr.vmem [resolvable:$true] %s1976
          %s1978 = sshll.u32 %s1974, 4
          %s1979 = int_to_ptr.hbm [resolvable:$true] %s1978
          %1981 = dma.vmem_to_hbm [thread:$0]  %s1977, 128, %s1979, %s1959
        $region68: #{tpu_custom_call.1} parent=63 // pred_fallthru
          _
        // Predicated region
        $region69: #{tpu_custom_call.1} parent=63 // pred_check
          %p1982 = pneg %p320
        $region70: #{tpu_custom_call.1} parent=63 // pred_check_branch
          %1984 = sbr.rel (%p1982) target = $region72
        $region71: #{tpu_custom_call.1} parent=63 // pred_region
          %1986 = vsyncadd %s1964, 0
          %s1987 = smul.addr %s30, 8
          %s1988 = smul.addr %s1987, 8
          %s1989 = scalar_lea.hbm %s12, %s1988
          %s1990 = sshll.u32 %s1967, 4
          %s1991 = int_to_ptr.vmem [resolvable:$true] %s1990
          %s1992 = sshll.u32 %s1989, 4
          %s1993 = int_to_ptr.hbm [resolvable:$true] %s1992
          %1998 = dma.vmem_to_hbm [thread:$0]  %s1991, 1024, %s1993, %s1964, 128, 128, 8
        $region72: #{tpu_custom_call.1} parent=63 // pred_fallthru
          _
      $region64: #{tpu_custom_call.1} parent=5 // pred_fallthru
        _
      %p1999 = scmp.le.s32.totalorder 2, %s25
      // Predicated region
      $region73: #{tpu_custom_call.1} parent=5 // pred_check
        %p2000 = pneg %p1999
      $region74: #{tpu_custom_call.1} parent=5 // pred_check_branch
        %2002 = sbr.rel (%p2000) target = $region76
      $region75: #{tpu_custom_call.1} parent=5 // pred_region
        %s2003 = ssub.s32 %s25, 2
        // Predicated region
        $region77: #{tpu_custom_call.1} parent=75 // pred_check
          %p2004 = pneg %p300
        $region78: #{tpu_custom_call.1} parent=75 // pred_check_branch
          %2006 = sbr.rel (%p2004) target = $region80
        $region79: #{tpu_custom_call.1} parent=75 // pred_region
          %s2007 = sand.u32 %s285, 1
          %s2008 = scalar_lea.sflag [#allocation3], %s2007
          %s2009 = sand.u32 %s285, 1
          %s2010 = smul.addr %s2009, 8
          %s2011 = scalar_lea.vmem [#allocation2], %s2010
          %2013 = dma.done %s2008, 128
        $region80: #{tpu_custom_call.1} parent=75 // pred_fallthru
          _
        // Predicated region
        $region81: #{tpu_custom_call.1} parent=75 // pred_check
          %p2014 = pneg %p326
        $region82: #{tpu_custom_call.1} parent=75 // pred_check_branch
          %2016 = sbr.rel (%p2014) target = $region84
        $region83: #{tpu_custom_call.1} parent=75 // pred_region
          %s2017 = sand.u32 %s311, 1
          %s2018 = scalar_lea.sflag [#allocation5], %s2017
          %s2019 = sand.u32 %s311, 1
          %s2020 = smul.addr %s2019, 64
          %s2021 = scalar_lea.vmem [#allocation4], %s2020
          %2023 = dma.done %s2018, 1024
        $region84: #{tpu_custom_call.1} parent=75 // pred_fallthru
          _
      $region76: #{tpu_custom_call.1} parent=5 // pred_fallthru
        _
    $region6: #{tpu_custom_call.1} parent=1 // loop_footer
      %s29 = sadd.s32 1, %s25
    $region7: #{tpu_custom_call.1} parent=1 // loop_footer_branch
      %24 = sbr.rel target = $region3
    $region8: #{tpu_custom_call.1} parent=1 // loop_exit
      _
    %2024 = vsyncpa [#allocation3], 1
    %s2025 = scalar_lea.sflag [#allocation3], 1
    %2026 = vsyncpa %s2025, 1
    %2027 = vsyncpa [#allocation5], 1
    %s2028 = scalar_lea.sflag [#allocation5], 1
    %2029 = vsyncpa %s2028, 1

</llo_original>
